<compile_context>
chip_gen: v7x
topology: tpu7x:2x2x1
jax: 0.10.0
libtpu: 0.0.40
codegen_flags: <defaults>
</compile_context>

<pallas_src>
import jax
import jax.numpy as jnp
from jax.experimental import pallas as pl
from jax.experimental.pallas import tpu as pltpu


# ----------------------------- Pallas kernel --------------------------------
def bilstm_kernel(x_ref, wx_ref, wh_ref, out_ref, gx_ref):
    """Fused bidirectional LSTM recurrence (both directions share each gate block).

    x_ref  : [T*Bp, 2*Ep] bf16  time-major augmented input: block t = [x[t] | x[T-1-t]],
                                with a constant-1 bias lane at column E of the fwd half
    wx_ref : [2*Ep, 4*Hp] bf16  input->gate weights, gate order (i,f,o,g); within each
                                Hp=128-lane gate block: fwd lanes 0:H, bwd lanes H:2H;
                                folded bias (b_ih+b_hh) lives in row E
    wh_ref : [Hp, 4*Hp]   bf16  recurrent weights, same gate/direction layout
    out_ref: [Bp, Hp]     f32   [h_fwd | h_bwd | 0] final hidden states (lane-dense)
    gx_ref : [T*Bp, 4*Hp] f32   VMEM scratch holding the hoisted input projection
    """
    Bp, Hp = out_ref.shape
    T = x_ref.shape[0] // Bp

    # One MXU pass for the whole input projection (bias folded in); parked in VMEM
    # scratch so the [T*Bp, 4*Hp] result is not a live SSA value across the loop.
    gx_ref[...] = jnp.dot(x_ref[...], wx_ref[...],
                          preferred_element_type=jnp.float32)

    h = jnp.zeros((Bp, Hp), jnp.float32)
    c = jnp.zeros((Bp, Hp), jnp.float32)

    # Fully unrolled fused fwd+bwd recurrence: one [Bp,Hp]x[Hp,4Hp] matmul per step.
    for t in range(T):
        gx_t = gx_ref[t * Bp:(t + 1) * Bp, :]                      # [Bp, 4Hp] tile-aligned
        gh = jnp.dot(h.astype(jnp.bfloat16), wh_ref[...],
                     preferred_element_type=jnp.float32)           # [Bp, 4Hp]
        gates = gx_t + gh

        # gate blocks: [ i | f | o | g ], each Hp lanes wide.
        # sigmoid(x) = 0.5*tanh(0.5*x) + 0.5  -> one wide EUP call for i,f,o.
        sig = 0.5 * jnp.tanh(0.5 * gates[:, 0:3 * Hp]) + 0.5       # [Bp, 3Hp]
        g_g = jnp.tanh(gates[:, 3 * Hp:4 * Hp])                    # [Bp, Hp]
        i_g = sig[:, 0:Hp]
        f_g = sig[:, Hp:2 * Hp]
        o_g = sig[:, 2 * Hp:3 * Hp]

        c = f_g * c + i_g * g_g
        h = o_g * jnp.tanh(c)

    out_ref[...] = h


# ----------------------------- weight packing ---------------------------------
def _pack_params(params, H, Hp, E, Ep):
    """Pack PyTorch-layout LSTM weights into the dense dual-direction bf16 layout."""
    # PyTorch gate order in the 4H axis is (i, f, g, o); our block order is (i, f, o, g).
    src_order = (0, 1, 3, 2)

    def place(dst, src, row0, rows, lane0):
        # src: [rows, 4H] torch gate order -> scatter gates into dst's 4 gate blocks.
        for dk, sk in enumerate(src_order):
            dst = dst.at[row0:row0 + rows,
                         dk * Hp + lane0: dk * Hp + lane0 + H].set(src[:, sk * H:(sk + 1) * H])
        return dst

    Wx = jnp.zeros((2 * Ep, 4 * Hp), jnp.float32)
    Wx = place(Wx, params["wih_f"], 0, E, 0)       # fwd input weights  -> lanes 0:H
    Wx = place(Wx, params["wih_b"], Ep, E, H)      # bwd input weights  -> lanes H:2H
    Wx = place(Wx, params["b_f"], E, 1, 0)         # folded fwd bias in constant-1 row E
    Wx = place(Wx, params["b_b"], E, 1, H)         # folded bwd bias in constant-1 row E

    Wh = jnp.zeros((Hp, 4 * Hp), jnp.float32)
    Wh = place(Wh, params["whh_f"], 0, H, 0)       # h_fwd rows 0:H  -> fwd lanes
    Wh = place(Wh, params["whh_b"], H, H, H)       # h_bwd rows H:2H -> bwd lanes

    return Wx.astype(jnp.bfloat16), Wh.astype(jnp.bfloat16)


# ------------------------------- wrapper -------------------------------------
def mymodel_forward(ids, params, H=32, Hp=128, Ep=128, Bp=8):
    """ids: int32 [B, T] token indices. Returns log-probs [B, 2]."""
    B, T = ids.shape
    E = params["embedding"].shape[1]

    # embedding gather + layout plumbing stays in XLA glue
    x = params["embedding"][ids].astype(jnp.float32)          # [B, T, E]
    x = jnp.transpose(x, (1, 0, 2))                           # [T, B, E]  time-major
    x = jnp.pad(x, ((0, 0), (0, Bp - B), (0, Ep - E)))        # [T, Bp, Ep]
    x = x.at[:, :, E].set(1.0)                                # constant-1 bias lane
    x_aug = jnp.concatenate([x, x[::-1]], axis=-1)            # [T, Bp, 2Ep]  fwd | time-reversed
    x2d = x_aug.reshape(T * Bp, 2 * Ep).astype(jnp.bfloat16)  # [T*Bp, 2Ep]

    Wx, Wh = _pack_params(params, H, Hp, E, Ep)               # bf16, dense-packed

    cost = pl.CostEstimate(
        flops=2 * T * Bp * (2 * Ep) * (4 * Hp) + T * 2 * Bp * Hp * (4 * Hp),
        transcendentals=T * Bp * 5 * Hp,
        bytes_accessed=x2d.size * 2 + Wx.size * 2 + Wh.size * 2 + Bp * Hp * 4,
    )

    vmem = pl.BlockSpec(memory_space=pltpu.MemorySpace.VMEM)
    hcat_p = pl.pallas_call(
        bilstm_kernel,
        out_shape=jax.ShapeDtypeStruct((Bp, Hp), jnp.float32),
        in_specs=[vmem] * 3,
        out_specs=vmem,
        scratch_shapes=[pltpu.VMEM((T * Bp, 4 * Hp), jnp.float32)],
        cost_estimate=cost,
    )(x2d, Wx, Wh)                                            # [Bp, Hp] = [h_fwd|h_bwd|0]

    # FC + log_softmax in glue (tiny [B,2H]x[2H,2] matmul + 2-lane output)
    h_fw = hcat_p[:B, 0:H]
    h_bw = hcat_p[:B, H:2 * H]
    hcat = jnp.concatenate([h_fw, h_bw], axis=-1)             # [B, 2H]
    logits = hcat @ params["wfc"] + params["bfc"]             # [B, 2]
    return jax.nn.log_softmax(logits, axis=-1)


# --------------------------- pure-JAX reference -------------------------------
def reference_forward(ids, params):
    x = params["embedding"][ids].astype(jnp.float32)          # [B, T, E]
    B, T, E = x.shape
    H = params["whh_f"].shape[0]

    def run_dir(xs, wih, whh, b):
        h = jnp.zeros((B, H), jnp.float32)
        c = jnp.zeros((B, H), jnp.float32)
        for t in range(xs.shape[1]):
            gates = xs[:, t, :] @ wih + h @ whh + b
            i = jax.nn.sigmoid(gates[:, 0:H])
            f = jax.nn.sigmoid(gates[:, H:2 * H])
            g = jnp.tanh(gates[:, 2 * H:3 * H])
            o = jax.nn.sigmoid(gates[:, 3 * H:4 * H])
            c = f * c + i * g
            h = o * jnp.tanh(c)
        return h

    h_fw = run_dir(x, params["wih_f"], params["whh_f"], params["b_f"])
    h_bw = run_dir(x[:, ::-1, :], params["wih_b"], params["whh_b"], params["b_b"])
    logits = jnp.concatenate([h_fw, h_bw], axis=-1) @ params["wfc"] + params["bfc"]
    return jax.nn.log_softmax(logits, axis=-1)


# --------------------------------- main ---------------------------------------
if __name__ == "__main__":
    # Small, module-consistent shapes: vocab=50, embed_dim=100 (nn.Embedding(len(ws),100)),
    # hidden=32, num_layers=1, bidirectional=True, batch=2, seq=8.
    V, E, H = 50, 100, 32
    B, T = 2, 8

    key = jax.random.PRNGKey(0)
    ks = jax.random.split(key, 12)

    k_lstm = 1.0 / jnp.sqrt(jnp.float32(H))
    k_fc = 1.0 / jnp.sqrt(jnp.float32(2 * H))

    def uni(k, shape, scale):
        return jax.random.uniform(k, shape, jnp.float32, -scale, scale)

    params = {
        # nn.Embedding(V, E) init ~ N(0, 1)
        "embedding": jax.random.normal(ks[0], (V, E), jnp.float32),
        # forward-direction LSTM (PyTorch stores (4H,E)/(4H,H); we keep transposes)
        "wih_f": uni(ks[1], (E, 4 * H), k_lstm),
        "whh_f": uni(ks[2], (H, 4 * H), k_lstm),
        "b_f": (uni(ks[3], (1, 4 * H), k_lstm) + uni(ks[4], (1, 4 * H), k_lstm)),  # b_ih + b_hh
        # backward-direction LSTM
        "wih_b": uni(ks[5], (E, 4 * H), k_lstm),
        "whh_b": uni(ks[6], (H, 4 * H), k_lstm),
        "b_b": (uni(ks[7], (1, 4 * H), k_lstm) + uni(ks[8], (1, 4 * H), k_lstm)),
        # fc: nn.Linear(2H, 2) — stored transposed as (2H, 2)
        "wfc": uni(ks[9], (2 * H, 2), k_fc),
        "bfc": uni(ks[10], (1, 2), k_fc),
    }
    # TODO(synk): nn.LSTM dropout only applies between stacked layers (num_layers>1); with a
    # single layer it is a no-op, so it is intentionally omitted.

    ids = jax.random.randint(ks[11], (B, T), 0, V, dtype=jnp.int32)

    forward = jax.jit(mymodel_forward)   # one fused executable: glue + pallas_call
    out = forward(ids, params)
    out = jax.block_until_ready(out)

    ref = reference_forward(ids, params)

    assert out.shape == (B, 2), out.shape
    assert bool(jnp.all(jnp.isfinite(out)))
    # log_softmax rows should exponentiate-sum to ~1
    assert bool(jnp.allclose(jnp.sum(jnp.exp(out), axis=-1), 1.0, atol=1e-4))
    # bf16 MXU operands vs f32 reference: comfortable at 2e-2
    assert bool(jnp.allclose(out, ref, atol=2e-2, rtol=2e-2))

    print("KERNEL_OK")
</pallas_src>

<mosaic_0001>
module attributes {stable_mosaic.version = 11 : i64} {
  func.func @bilstm_kernel(%arg0: memref<64x256xbf16, #tpu.memory_space<vmem>>, %arg1: memref<256x512xbf16, #tpu.memory_space<vmem>>, %arg2: memref<128x512xbf16, #tpu.memory_space<vmem>>, %arg3: memref<8x128xf32, #tpu.memory_space<vmem>>, %arg4: memref<64x512xf32, #tpu.memory_space<vmem>>) attributes {dimension_semantics = [], scalar_prefetch = 0 : i64, scratch_operands = 1 : i64, tpu.core_type = #tpu.core_type<tc>} {
    %c0 = arith.constant 0 : index
    %c0_0 = arith.constant 0 : index
    %0 = vector.load %arg0[%c0, %c0_0] : memref<64x256xbf16, #tpu.memory_space<vmem>>, vector<64x256xbf16>
    %c0_1 = arith.constant 0 : index
    %c0_2 = arith.constant 0 : index
    %1 = vector.load %arg1[%c0_1, %c0_2] : memref<256x512xbf16, #tpu.memory_space<vmem>>, vector<256x512xbf16>
    %cst = arith.constant dense<0.000000e+00> : vector<64x512xf32>
    %2 = tpu.matmul %0, %1, %cst {dimension_numbers = #tpu.dot_dimension_numbers<[1], [0], [0], [1], [0, 0, 1, 1], [], []>} : vector<64x256xbf16>, vector<256x512xbf16>, vector<64x512xf32> -> vector<64x512xf32>
    %c0_3 = arith.constant 0 : index
    %c0_4 = arith.constant 0 : index
    %3 = vector.load %arg4[%c0_3, %c0_4] : memref<64x512xf32, #tpu.memory_space<vmem>>, vector<64x512xf32>
    tpu.vector_store %arg4[%c0_3, %c0_4], %2 {strides = array<i32>} : memref<64x512xf32, #tpu.memory_space<vmem>>, vector<64x512xf32>,
    %cst_5 = arith.constant 0.000000e+00 : f32
    %4 = vector.broadcast %cst_5 : f32 to vector<8x128xf32>
    %cst_6 = arith.constant 0.000000e+00 : f32
    %5 = vector.broadcast %cst_6 : f32 to vector<8x128xf32>
    %c0_7 = arith.constant 0 : index
    %c0_8 = arith.constant 0 : index
    %6 = vector.load %arg4[%c0_7, %c0_8] : memref<64x512xf32, #tpu.memory_space<vmem>>, vector<8x512xf32>
    %7 = arith.truncf %4 : vector<8x128xf32> to vector<8x128xbf16>
    %c0_9 = arith.constant 0 : index
    %c0_10 = arith.constant 0 : index
    %8 = vector.load %arg2[%c0_9, %c0_10] : memref<128x512xbf16, #tpu.memory_space<vmem>>, vector<128x512xbf16>
    %cst_11 = arith.constant dense<0.000000e+00> : vector<8x512xf32>
    %9 = tpu.matmul %7, %8, %cst_11 {dimension_numbers = #tpu.dot_dimension_numbers<[1], [0], [0], [1], [0, 0, 1, 1], [], []>} : vector<8x128xbf16>, vector<128x512xbf16>, vector<8x512xf32> -> vector<8x512xf32>
    %10 = arith.addf %6, %9 : vector<8x512xf32>
    %11 = vector.extract_strided_slice %10 {offsets = [0, 0], sizes = [8, 384], strides = [1, 1]} : vector<8x512xf32> to vector<8x384xf32>
    %cst_12 = arith.constant 5.000000e-01 : f32
    %12 = vector.broadcast %cst_12 : f32 to vector<8x384xf32>
    %13 = arith.mulf %12, %11 : vector<8x384xf32>
    %14 = math.tanh %13 : vector<8x384xf32>
    %cst_13 = arith.constant 5.000000e-01 : f32
    %15 = vector.broadcast %cst_13 : f32 to vector<8x384xf32>
    %16 = arith.mulf %15, %14 : vector<8x384xf32>
    %cst_14 = arith.constant 5.000000e-01 : f32
    %17 = vector.broadcast %cst_14 : f32 to vector<8x384xf32>
    %18 = arith.addf %16, %17 : vector<8x384xf32>
    %19 = vector.extract_strided_slice %10 {offsets = [0, 384], sizes = [8, 128], strides = [1, 1]} : vector<8x512xf32> to vector<8x128xf32>
    %20 = math.tanh %19 : vector<8x128xf32>
    %21 = vector.extract_strided_slice %18 {offsets = [0, 0], sizes = [8, 128], strides = [1, 1]} : vector<8x384xf32> to vector<8x128xf32>
    %22 = vector.extract_strided_slice %18 {offsets = [0, 128], sizes = [8, 128], strides = [1, 1]} : vector<8x384xf32> to vector<8x128xf32>
    %23 = vector.extract_strided_slice %18 {offsets = [0, 256], sizes = [8, 128], strides = [1, 1]} : vector<8x384xf32> to vector<8x128xf32>
    %24 = arith.mulf %22, %5 : vector<8x128xf32>
    %25 = arith.mulf %21, %20 : vector<8x128xf32>
    %26 = arith.addf %24, %25 : vector<8x128xf32>
    %27 = math.tanh %26 : vector<8x128xf32>
    %28 = arith.mulf %23, %27 : vector<8x128xf32>
    %c8 = arith.constant 8 : index
    %c0_15 = arith.constant 0 : index
    %29 = vector.load %arg4[%c8, %c0_15] : memref<64x512xf32, #tpu.memory_space<vmem>>, vector<8x512xf32>
    %30 = arith.truncf %28 : vector<8x128xf32> to vector<8x128xbf16>
    %c0_16 = arith.constant 0 : index
    %c0_17 = arith.constant 0 : index
    %31 = vector.load %arg2[%c0_16, %c0_17] : memref<128x512xbf16, #tpu.memory_space<vmem>>, vector<128x512xbf16>
    %cst_18 = arith.constant dense<0.000000e+00> : vector<8x512xf32>
    %32 = tpu.matmul %30, %31, %cst_18 {dimension_numbers = #tpu.dot_dimension_numbers<[1], [0], [0], [1], [0, 0, 1, 1], [], []>} : vector<8x128xbf16>, vector<128x512xbf16>, vector<8x512xf32> -> vector<8x512xf32>
    %33 = arith.addf %29, %32 : vector<8x512xf32>
    %34 = vector.extract_strided_slice %33 {offsets = [0, 0], sizes = [8, 384], strides = [1, 1]} : vector<8x512xf32> to vector<8x384xf32>
    %cst_19 = arith.constant 5.000000e-01 : f32
    %35 = vector.broadcast %cst_19 : f32 to vector<8x384xf32>
    %36 = arith.mulf %35, %34 : vector<8x384xf32>
    %37 = math.tanh %36 : vector<8x384xf32>
    %cst_20 = arith.constant 5.000000e-01 : f32
    %38 = vector.broadcast %cst_20 : f32 to vector<8x384xf32>
    %39 = arith.mulf %38, %37 : vector<8x384xf32>
    %cst_21 = arith.constant 5.000000e-01 : f32
    %40 = vector.broadcast %cst_21 : f32 to vector<8x384xf32>
    %41 = arith.addf %39, %40 : vector<8x384xf32>
    %42 = vector.extract_strided_slice %33 {offsets = [0, 384], sizes = [8, 128], strides = [1, 1]} : vector<8x512xf32> to vector<8x128xf32>
    %43 = math.tanh %42 : vector<8x128xf32>
    %44 = vector.extract_strided_slice %41 {offsets = [0, 0], sizes = [8, 128], strides = [1, 1]} : vector<8x384xf32> to vector<8x128xf32>
    %45 = vector.extract_strided_slice %41 {offsets = [0, 128], sizes = [8, 128], strides = [1, 1]} : vector<8x384xf32> to vector<8x128xf32>
    %46 = vector.extract_strided_slice %41 {offsets = [0, 256], sizes = [8, 128], strides = [1, 1]} : vector<8x384xf32> to vector<8x128xf32>
    %47 = arith.mulf %45, %26 : vector<8x128xf32>
    %48 = arith.mulf %44, %43 : vector<8x128xf32>
    %49 = arith.addf %47, %48 : vector<8x128xf32>
    %50 = math.tanh %49 : vector<8x128xf32>
    %51 = arith.mulf %46, %50 : vector<8x128xf32>
    %c16 = arith.constant 16 : index
    %c0_22 = arith.constant 0 : index
    %52 = vector.load %arg4[%c16, %c0_22] : memref<64x512xf32, #tpu.memory_space<vmem>>, vector<8x512xf32>
    %53 = arith.truncf %51 : vector<8x128xf32> to vector<8x128xbf16>
    %c0_23 = arith.constant 0 : index
    %c0_24 = arith.constant 0 : index
    %54 = vector.load %arg2[%c0_23, %c0_24] : memref<128x512xbf16, #tpu.memory_space<vmem>>, vector<128x512xbf16>
    %cst_25 = arith.constant dense<0.000000e+00> : vector<8x512xf32>
    %55 = tpu.matmul %53, %54, %cst_25 {dimension_numbers = #tpu.dot_dimension_numbers<[1], [0], [0], [1], [0, 0, 1, 1], [], []>} : vector<8x128xbf16>, vector<128x512xbf16>, vector<8x512xf32> -> vector<8x512xf32>
    %56 = arith.addf %52, %55 : vector<8x512xf32>
    %57 = vector.extract_strided_slice %56 {offsets = [0, 0], sizes = [8, 384], strides = [1, 1]} : vector<8x512xf32> to vector<8x384xf32>
    %cst_26 = arith.constant 5.000000e-01 : f32
    %58 = vector.broadcast %cst_26 : f32 to vector<8x384xf32>
    %59 = arith.mulf %58, %57 : vector<8x384xf32>
    %60 = math.tanh %59 : vector<8x384xf32>
    %cst_27 = arith.constant 5.000000e-01 : f32
    %61 = vector.broadcast %cst_27 : f32 to vector<8x384xf32>
    %62 = arith.mulf %61, %60 : vector<8x384xf32>
    %cst_28 = arith.constant 5.000000e-01 : f32
    %63 = vector.broadcast %cst_28 : f32 to vector<8x384xf32>
    %64 = arith.addf %62, %63 : vector<8x384xf32>
    %65 = vector.extract_strided_slice %56 {offsets = [0, 384], sizes = [8, 128], strides = [1, 1]} : vector<8x512xf32> to vector<8x128xf32>
    %66 = math.tanh %65 : vector<8x128xf32>
    %67 = vector.extract_strided_slice %64 {offsets = [0, 0], sizes = [8, 128], strides = [1, 1]} : vector<8x384xf32> to vector<8x128xf32>
    %68 = vector.extract_strided_slice %64 {offsets = [0, 128], sizes = [8, 128], strides = [1, 1]} : vector<8x384xf32> to vector<8x128xf32>
    %69 = vector.extract_strided_slice %64 {offsets = [0, 256], sizes = [8, 128], strides = [1, 1]} : vector<8x384xf32> to vector<8x128xf32>
    %70 = arith.mulf %68, %49 : vector<8x128xf32>
    %71 = arith.mulf %67, %66 : vector<8x128xf32>
    %72 = arith.addf %70, %71 : vector<8x128xf32>
    %73 = math.tanh %72 : vector<8x128xf32>
    %74 = arith.mulf %69, %73 : vector<8x128xf32>
    %c24 = arith.constant 24 : index
    %c0_29 = arith.constant 0 : index
    %75 = vector.load %arg4[%c24, %c0_29] : memref<64x512xf32, #tpu.memory_space<vmem>>, vector<8x512xf32>
    %76 = arith.truncf %74 : vector<8x128xf32> to vector<8x128xbf16>
    %c0_30 = arith.constant 0 : index
    %c0_31 = arith.constant 0 : index
    %77 = vector.load %arg2[%c0_30, %c0_31] : memref<128x512xbf16, #tpu.memory_space<vmem>>, vector<128x512xbf16>
    %cst_32 = arith.constant dense<0.000000e+00> : vector<8x512xf32>
    %78 = tpu.matmul %76, %77, %cst_32 {dimension_numbers = #tpu.dot_dimension_numbers<[1], [0], [0], [1], [0, 0, 1, 1], [], []>} : vector<8x128xbf16>, vector<128x512xbf16>, vector<8x512xf32> -> vector<8x512xf32>
    %79 = arith.addf %75, %78 : vector<8x512xf32>
    %80 = vector.extract_strided_slice %79 {offsets = [0, 0], sizes = [8, 384], strides = [1, 1]} : vector<8x512xf32> to vector<8x384xf32>
    %cst_33 = arith.constant 5.000000e-01 : f32
    %81 = vector.broadcast %cst_33 : f32 to vector<8x384xf32>
    %82 = arith.mulf %81, %80 : vector<8x384xf32>
    %83 = math.tanh %82 : vector<8x384xf32>
    %cst_34 = arith.constant 5.000000e-01 : f32
    %84 = vector.broadcast %cst_34 : f32 to vector<8x384xf32>
    %85 = arith.mulf %84, %83 : vector<8x384xf32>
    %cst_35 = arith.constant 5.000000e-01 : f32
    %86 = vector.broadcast %cst_35 : f32 to vector<8x384xf32>
    %87 = arith.addf %85, %86 : vector<8x384xf32>
    %88 = vector.extract_strided_slice %79 {offsets = [0, 384], sizes = [8, 128], strides = [1, 1]} : vector<8x512xf32> to vector<8x128xf32>
    %89 = math.tanh %88 : vector<8x128xf32>
    %90 = vector.extract_strided_slice %87 {offsets = [0, 0], sizes = [8, 128], strides = [1, 1]} : vector<8x384xf32> to vector<8x128xf32>
    %91 = vector.extract_strided_slice %87 {offsets = [0, 128], sizes = [8, 128], strides = [1, 1]} : vector<8x384xf32> to vector<8x128xf32>
    %92 = vector.extract_strided_slice %87 {offsets = [0, 256], sizes = [8, 128], strides = [1, 1]} : vector<8x384xf32> to vector<8x128xf32>
    %93 = arith.mulf %91, %72 : vector<8x128xf32>
    %94 = arith.mulf %90, %89 : vector<8x128xf32>
    %95 = arith.addf %93, %94 : vector<8x128xf32>
    %96 = math.tanh %95 : vector<8x128xf32>
    %97 = arith.mulf %92, %96 : vector<8x128xf32>
    %c32 = arith.constant 32 : index
    %c0_36 = arith.constant 0 : index
    %98 = vector.load %arg4[%c32, %c0_36] : memref<64x512xf32, #tpu.memory_space<vmem>>, vector<8x512xf32>
    %99 = arith.truncf %97 : vector<8x128xf32> to vector<8x128xbf16>
    %c0_37 = arith.constant 0 : index
    %c0_38 = arith.constant 0 : index
    %100 = vector.load %arg2[%c0_37, %c0_38] : memref<128x512xbf16, #tpu.memory_space<vmem>>, vector<128x512xbf16>
    %cst_39 = arith.constant dense<0.000000e+00> : vector<8x512xf32>
    %101 = tpu.matmul %99, %100, %cst_39 {dimension_numbers = #tpu.dot_dimension_numbers<[1], [0], [0], [1], [0, 0, 1, 1], [], []>} : vector<8x128xbf16>, vector<128x512xbf16>, vector<8x512xf32> -> vector<8x512xf32>
    %102 = arith.addf %98, %101 : vector<8x512xf32>
    %103 = vector.extract_strided_slice %102 {offsets = [0, 0], sizes = [8, 384], strides = [1, 1]} : vector<8x512xf32> to vector<8x384xf32>
    %cst_40 = arith.constant 5.000000e-01 : f32
    %104 = vector.broadcast %cst_40 : f32 to vector<8x384xf32>
    %105 = arith.mulf %104, %103 : vector<8x384xf32>
    %106 = math.tanh %105 : vector<8x384xf32>
    %cst_41 = arith.constant 5.000000e-01 : f32
    %107 = vector.broadcast %cst_41 : f32 to vector<8x384xf32>
    %108 = arith.mulf %107, %106 : vector<8x384xf32>
    %cst_42 = arith.constant 5.000000e-01 : f32
    %109 = vector.broadcast %cst_42 : f32 to vector<8x384xf32>
    %110 = arith.addf %108, %109 : vector<8x384xf32>
    %111 = vector.extract_strided_slice %102 {offsets = [0, 384], sizes = [8, 128], strides = [1, 1]} : vector<8x512xf32> to vector<8x128xf32>
    %112 = math.tanh %111 : vector<8x128xf32>
    %113 = vector.extract_strided_slice %110 {offsets = [0, 0], sizes = [8, 128], strides = [1, 1]} : vector<8x384xf32> to vector<8x128xf32>
    %114 = vector.extract_strided_slice %110 {offsets = [0, 128], sizes = [8, 128], strides = [1, 1]} : vector<8x384xf32> to vector<8x128xf32>
    %115 = vector.extract_strided_slice %110 {offsets = [0, 256], sizes = [8, 128], strides = [1, 1]} : vector<8x384xf32> to vector<8x128xf32>
    %116 = arith.mulf %114, %95 : vector<8x128xf32>
    %117 = arith.mulf %113, %112 : vector<8x128xf32>
    %118 = arith.addf %116, %117 : vector<8x128xf32>
    %119 = math.tanh %118 : vector<8x128xf32>
    %120 = arith.mulf %115, %119 : vector<8x128xf32>
    %c40 = arith.constant 40 : index
    %c0_43 = arith.constant 0 : index
    %121 = vector.load %arg4[%c40, %c0_43] : memref<64x512xf32, #tpu.memory_space<vmem>>, vector<8x512xf32>
    %122 = arith.truncf %120 : vector<8x128xf32> to vector<8x128xbf16>
    %c0_44 = arith.constant 0 : index
    %c0_45 = arith.constant 0 : index
    %123 = vector.load %arg2[%c0_44, %c0_45] : memref<128x512xbf16, #tpu.memory_space<vmem>>, vector<128x512xbf16>
    %cst_46 = arith.constant dense<0.000000e+00> : vector<8x512xf32>
    %124 = tpu.matmul %122, %123, %cst_46 {dimension_numbers = #tpu.dot_dimension_numbers<[1], [0], [0], [1], [0, 0, 1, 1], [], []>} : vector<8x128xbf16>, vector<128x512xbf16>, vector<8x512xf32> -> vector<8x512xf32>
    %125 = arith.addf %121, %124 : vector<8x512xf32>
    %126 = vector.extract_strided_slice %125 {offsets = [0, 0], sizes = [8, 384], strides = [1, 1]} : vector<8x512xf32> to vector<8x384xf32>
    %cst_47 = arith.constant 5.000000e-01 : f32
    %127 = vector.broadcast %cst_47 : f32 to vector<8x384xf32>
    %128 = arith.mulf %127, %126 : vector<8x384xf32>
    %129 = math.tanh %128 : vector<8x384xf32>
    %cst_48 = arith.constant 5.000000e-01 : f32
    %130 = vector.broadcast %cst_48 : f32 to vector<8x384xf32>
    %131 = arith.mulf %130, %129 : vector<8x384xf32>
    %cst_49 = arith.constant 5.000000e-01 : f32
    %132 = vector.broadcast %cst_49 : f32 to vector<8x384xf32>
    %133 = arith.addf %131, %132 : vector<8x384xf32>
    %134 = vector.extract_strided_slice %125 {offsets = [0, 384], sizes = [8, 128], strides = [1, 1]} : vector<8x512xf32> to vector<8x128xf32>
    %135 = math.tanh %134 : vector<8x128xf32>
    %136 = vector.extract_strided_slice %133 {offsets = [0, 0], sizes = [8, 128], strides = [1, 1]} : vector<8x384xf32> to vector<8x128xf32>
    %137 = vector.extract_strided_slice %133 {offsets = [0, 128], sizes = [8, 128], strides = [1, 1]} : vector<8x384xf32> to vector<8x128xf32>
    %138 = vector.extract_strided_slice %133 {offsets = [0, 256], sizes = [8, 128], strides = [1, 1]} : vector<8x384xf32> to vector<8x128xf32>
    %139 = arith.mulf %137, %118 : vector<8x128xf32>
    %140 = arith.mulf %136, %135 : vector<8x128xf32>
    %141 = arith.addf %139, %140 : vector<8x128xf32>
    %142 = math.tanh %141 : vector<8x128xf32>
    %143 = arith.mulf %138, %142 : vector<8x128xf32>
    %c48 = arith.constant 48 : index
    %c0_50 = arith.constant 0 : index
    %144 = vector.load %arg4[%c48, %c0_50] : memref<64x512xf32, #tpu.memory_space<vmem>>, vector<8x512xf32>
    %145 = arith.truncf %143 : vector<8x128xf32> to vector<8x128xbf16>
    %c0_51 = arith.constant 0 : index
    %c0_52 = arith.constant 0 : index
    %146 = vector.load %arg2[%c0_51, %c0_52] : memref<128x512xbf16, #tpu.memory_space<vmem>>, vector<128x512xbf16>
    %cst_53 = arith.constant dense<0.000000e+00> : vector<8x512xf32>
    %147 = tpu.matmul %145, %146, %cst_53 {dimension_numbers = #tpu.dot_dimension_numbers<[1], [0], [0], [1], [0, 0, 1, 1], [], []>} : vector<8x128xbf16>, vector<128x512xbf16>, vector<8x512xf32> -> vector<8x512xf32>
    %148 = arith.addf %144, %147 : vector<8x512xf32>
    %149 = vector.extract_strided_slice %148 {offsets = [0, 0], sizes = [8, 384], strides = [1, 1]} : vector<8x512xf32> to vector<8x384xf32>
    %cst_54 = arith.constant 5.000000e-01 : f32
    %150 = vector.broadcast %cst_54 : f32 to vector<8x384xf32>
    %151 = arith.mulf %150, %149 : vector<8x384xf32>
    %152 = math.tanh %151 : vector<8x384xf32>
    %cst_55 = arith.constant 5.000000e-01 : f32
    %153 = vector.broadcast %cst_55 : f32 to vector<8x384xf32>
    %154 = arith.mulf %153, %152 : vector<8x384xf32>
    %cst_56 = arith.constant 5.000000e-01 : f32
    %155 = vector.broadcast %cst_56 : f32 to vector<8x384xf32>
    %156 = arith.addf %154, %155 : vector<8x384xf32>
    %157 = vector.extract_strided_slice %148 {offsets = [0, 384], sizes = [8, 128], strides = [1, 1]} : vector<8x512xf32> to vector<8x128xf32>
    %158 = math.tanh %157 : vector<8x128xf32>
    %159 = vector.extract_strided_slice %156 {offsets = [0, 0], sizes = [8, 128], strides = [1, 1]} : vector<8x384xf32> to vector<8x128xf32>
    %160 = vector.extract_strided_slice %156 {offsets = [0, 128], sizes = [8, 128], strides = [1, 1]} : vector<8x384xf32> to vector<8x128xf32>
    %161 = vector.extract_strided_slice %156 {offsets = [0, 256], sizes = [8, 128], strides = [1, 1]} : vector<8x384xf32> to vector<8x128xf32>
    %162 = arith.mulf %160, %141 : vector<8x128xf32>
    %163 = arith.mulf %159, %158 : vector<8x128xf32>
    %164 = arith.addf %162, %163 : vector<8x128xf32>
    %165 = math.tanh %164 : vector<8x128xf32>
    %166 = arith.mulf %161, %165 : vector<8x128xf32>
    %c56 = arith.constant 56 : index
    %c0_57 = arith.constant 0 : index
    %167 = vector.load %arg4[%c56, %c0_57] : memref<64x512xf32, #tpu.memory_space<vmem>>, vector<8x512xf32>
    %168 = arith.truncf %166 : vector<8x128xf32> to vector<8x128xbf16>
    %c0_58 = arith.constant 0 : index
    %c0_59 = arith.constant 0 : index
    %169 = vector.load %arg2[%c0_58, %c0_59] : memref<128x512xbf16, #tpu.memory_space<vmem>>, vector<128x512xbf16>
    %cst_60 = arith.constant dense<0.000000e+00> : vector<8x512xf32>
    %170 = tpu.matmul %168, %169, %cst_60 {dimension_numbers = #tpu.dot_dimension_numbers<[1], [0], [0], [1], [0, 0, 1, 1], [], []>} : vector<8x128xbf16>, vector<128x512xbf16>, vector<8x512xf32> -> vector<8x512xf32>
    %171 = arith.addf %167, %170 : vector<8x512xf32>
    %172 = vector.extract_strided_slice %171 {offsets = [0, 0], sizes = [8, 384], strides = [1, 1]} : vector<8x512xf32> to vector<8x384xf32>
    %cst_61 = arith.constant 5.000000e-01 : f32
    %173 = vector.broadcast %cst_61 : f32 to vector<8x384xf32>
    %174 = arith.mulf %173, %172 : vector<8x384xf32>
    %175 = math.tanh %174 : vector<8x384xf32>
    %cst_62 = arith.constant 5.000000e-01 : f32
    %176 = vector.broadcast %cst_62 : f32 to vector<8x384xf32>
    %177 = arith.mulf %176, %175 : vector<8x384xf32>
    %cst_63 = arith.constant 5.000000e-01 : f32
    %178 = vector.broadcast %cst_63 : f32 to vector<8x384xf32>
    %179 = arith.addf %177, %178 : vector<8x384xf32>
    %180 = vector.extract_strided_slice %171 {offsets = [0, 384], sizes = [8, 128], strides = [1, 1]} : vector<8x512xf32> to vector<8x128xf32>
    %181 = math.tanh %180 : vector<8x128xf32>
    %182 = vector.extract_strided_slice %179 {offsets = [0, 0], sizes = [8, 128], strides = [1, 1]} : vector<8x384xf32> to vector<8x128xf32>
    %183 = vector.extract_strided_slice %179 {offsets = [0, 128], sizes = [8, 128], strides = [1, 1]} : vector<8x384xf32> to vector<8x128xf32>
    %184 = vector.extract_strided_slice %179 {offsets = [0, 256], sizes = [8, 128], strides = [1, 1]} : vector<8x384xf32> to vector<8x128xf32>
    %185 = arith.mulf %183, %164 : vector<8x128xf32>
    %186 = arith.mulf %182, %181 : vector<8x128xf32>
    %187 = arith.addf %185, %186 : vector<8x128xf32>
    %188 = math.tanh %187 : vector<8x128xf32>
    %189 = arith.mulf %184, %188 : vector<8x128xf32>
    %c0_64 = arith.constant 0 : index
    %c0_65 = arith.constant 0 : index
    %190 = vector.load %arg3[%c0_64, %c0_65] : memref<8x128xf32, #tpu.memory_space<vmem>>, vector<8x128xf32>
    tpu.vector_store %arg3[%c0_64, %c0_65], %189 {strides = array<i32>} : memref<8x128xf32, #tpu.memory_space<vmem>>, vector<8x128xf32>,
    return
  }
}

</mosaic_0001>

<llo_original>
// kernel: mymodel_forward.1
$region0: #{mymodel_forward.1}
  #allocation0 [shape = 'u32[]', space=smem, size = 0x4, offset = 0x4, fixed_abs, tag = 'smem constant byte address 0x4 - core index']
  #allocation1 [shape = 'u32[144,128]{1,0:T(1,128)}', space=vmem, size = 0x12000, scoped, tag = 'internal scratch']
  #allocation2 [shape = 'f32[64,512]{1,0:T(8,128)}', space=vmem, size = 0x20000, scoped, tag = 'scratch operand']
  %s0 = inlined_call_operand.vmem [shape: bf16[64,256], index: 0, kind: input, shape index: {}]
  %s1 = inlined_call_operand.vmem [shape: bf16[256,512], index: 1, kind: input, shape index: {}]
  %s2 = inlined_call_operand.vmem [shape: bf16[128,512], index: 2, kind: input, shape index: {}]
  %s3 = inlined_call_operand.vmem [shape: f32[8,128], index: 3, kind: output, shape index: {}]
  %s4 = sld [smem:[#allocation0]]
  $region22: #{mymodel_forward.1} parent=0
    _
  %s6 = ssub.s32 1, %s4
  %s7 = scalar_select 0, %s6, %s4
  // Predicated region
  $region2: #{mymodel_forward.1} parent=0 // pred_check
    _
  $region3: #{mymodel_forward.1} parent=0 // pred_check_branch
    %9 = sbr.rel (0) target = $region5
  $region4: #{mymodel_forward.1} parent=0 // pred_region
    _
  $region5: #{mymodel_forward.1} parent=0 // pred_fallthru
    _
  // Predicated region
  $region6: #{mymodel_forward.1} parent=0 // pred_check
    _
  $region7: #{mymodel_forward.1} parent=0 // pred_check_branch
    %11 = sbr.rel (0) target = $region9
  $region8: #{mymodel_forward.1} parent=0 // pred_region
    _
  $region9: #{mymodel_forward.1} parent=0 // pred_fallthru
    _
  // Predicated region
  $region10: #{mymodel_forward.1} parent=0 // pred_check
    _
  $region11: #{mymodel_forward.1} parent=0 // pred_check_branch
    %13 = sbr.rel (0) target = $region13
  $region12: #{mymodel_forward.1} parent=0 // pred_region
    _
  $region13: #{mymodel_forward.1} parent=0 // pred_fallthru
    _
  %v15 = vld [vmem:[%s0] sm:$0xff]
  %v16 = vld [vmem:[%s0 + $0x8] sm:$0xff]
  %v17 = vld [vmem:[%s0 + $0x10] sm:$0xff]
  %v18 = vld [vmem:[%s0 + $0x18] sm:$0xff]
  %v19 = vld [vmem:[%s0 + $0x20] sm:$0xff]
  %v20 = vld [vmem:[%s0 + $0x28] sm:$0xff]
  %v21 = vld [vmem:[%s0 + $0x30] sm:$0xff]
  %v22 = vld [vmem:[%s0 + $0x38] sm:$0xff]
  %v23 = vld [vmem:[%s1] sm:$0xff]
  %v24 = vld [vmem:[%s1 + $0x8] sm:$0xff]
  %v25 = vld [vmem:[%s1 + $0x10] sm:$0xff]
  %v26 = vld [vmem:[%s1 + $0x18] sm:$0xff]
  %v27 = vld [vmem:[%s1 + $0x20] sm:$0xff]
  %v28 = vld [vmem:[%s1 + $0x28] sm:$0xff]
  %v29 = vld [vmem:[%s1 + $0x30] sm:$0xff]
  %v30 = vld [vmem:[%s1 + $0x38] sm:$0xff]
  %v31 = vld [vmem:[%s1 + $0x40] sm:$0xff]
  %v32 = vld [vmem:[%s1 + $0x48] sm:$0xff]
  %v33 = vld [vmem:[%s1 + $0x50] sm:$0xff]
  %v34 = vld [vmem:[%s1 + $0x58] sm:$0xff]
  %v35 = vld [vmem:[%s1 + $0x60] sm:$0xff]
  %v36 = vld [vmem:[%s1 + $0x68] sm:$0xff]
  %v37 = vld [vmem:[%s1 + $0x70] sm:$0xff]
  %v38 = vld [vmem:[%s1 + $0x78] sm:$0xff]
  %v39 = vld [vmem:[%s1 + $0x80] sm:$0xff]
  %v40 = vld [vmem:[%s1 + $0x88] sm:$0xff]
  %v41 = vld [vmem:[%s1 + $0x90] sm:$0xff]
  %v42 = vld [vmem:[%s1 + $0x98] sm:$0xff]
  %v43 = vld [vmem:[%s1 + $0xa0] sm:$0xff]
  %v44 = vld [vmem:[%s1 + $0xa8] sm:$0xff]
  %v45 = vld [vmem:[%s1 + $0xb0] sm:$0xff]
  %v46 = vld [vmem:[%s1 + $0xb8] sm:$0xff]
  %v47 = vld [vmem:[%s1 + $0xc0] sm:$0xff]
  %v48 = vld [vmem:[%s1 + $0xc8] sm:$0xff]
  %v49 = vld [vmem:[%s1 + $0xd0] sm:$0xff]
  %v50 = vld [vmem:[%s1 + $0xd8] sm:$0xff]
  %v51 = vld [vmem:[%s1 + $0xe0] sm:$0xff]
  %v52 = vld [vmem:[%s1 + $0xe8] sm:$0xff]
  %v53 = vld [vmem:[%s1 + $0xf0] sm:$0xff]
  %v54 = vld [vmem:[%s1 + $0xf8] sm:$0xff]
  %v55 = vld [vmem:[%s1 + $0x100] sm:$0xff]
  %v56 = vld [vmem:[%s1 + $0x108] sm:$0xff]
  %v57 = vld [vmem:[%s1 + $0x110] sm:$0xff]
  %v58 = vld [vmem:[%s1 + $0x118] sm:$0xff]
  %v59 = vld [vmem:[%s1 + $0x120] sm:$0xff]
  %v60 = vld [vmem:[%s1 + $0x128] sm:$0xff]
  %v61 = vld [vmem:[%s1 + $0x130] sm:$0xff]
  %v62 = vld [vmem:[%s1 + $0x138] sm:$0xff]
  %v63 = vld [vmem:[%s1 + $0x140] sm:$0xff]
  %v64 = vld [vmem:[%s1 + $0x148] sm:$0xff]
  %v65 = vld [vmem:[%s1 + $0x150] sm:$0xff]
  %v66 = vld [vmem:[%s1 + $0x158] sm:$0xff]
  %v67 = vld [vmem:[%s1 + $0x160] sm:$0xff]
  %v68 = vld [vmem:[%s1 + $0x168] sm:$0xff]
  %v69 = vld [vmem:[%s1 + $0x170] sm:$0xff]
  %v70 = vld [vmem:[%s1 + $0x178] sm:$0xff]
  %v71 = vld [vmem:[%s1 + $0x180] sm:$0xff]
  %v72 = vld [vmem:[%s1 + $0x188] sm:$0xff]
  %v73 = vld [vmem:[%s1 + $0x190] sm:$0xff]
  %v74 = vld [vmem:[%s1 + $0x198] sm:$0xff]
  %v75 = vld [vmem:[%s1 + $0x1a0] sm:$0xff]
  %v76 = vld [vmem:[%s1 + $0x1a8] sm:$0xff]
  %v77 = vld [vmem:[%s1 + $0x1b0] sm:$0xff]
  %v78 = vld [vmem:[%s1 + $0x1b8] sm:$0xff]
  %v79 = vld [vmem:[%s1 + $0x1c0] sm:$0xff]
  %v80 = vld [vmem:[%s1 + $0x1c8] sm:$0xff]
  %v81 = vld [vmem:[%s1 + $0x1d0] sm:$0xff]
  %v82 = vld [vmem:[%s1 + $0x1d8] sm:$0xff]
  %v83 = vld [vmem:[%s1 + $0x1e0] sm:$0xff]
  %v84 = vld [vmem:[%s1 + $0x1e8] sm:$0xff]
  %v85 = vld [vmem:[%s1 + $0x1f0] sm:$0xff]
  %v86 = vld [vmem:[%s1 + $0x1f8] sm:$0xff]
  %v95 = vunpack.c.l.b16 %v15
  %v96 = vunpack.c.h.b16 %v15
  %v97 = vunpack.c.l.b16 %v16
  %v98 = vunpack.c.h.b16 %v16
  %v99 = vunpack.c.l.b16 %v17
  %v100 = vunpack.c.h.b16 %v17
  %v101 = vunpack.c.l.b16 %v18
  %v102 = vunpack.c.h.b16 %v18
  %v103 = vunpack.c.l.b16 %v19
  %v104 = vunpack.c.h.b16 %v19
  %v105 = vunpack.c.l.b16 %v20
  %v106 = vunpack.c.h.b16 %v20
  %v107 = vunpack.c.l.b16 %v21
  %v108 = vunpack.c.h.b16 %v21
  %v109 = vunpack.c.l.b16 %v22
  %v110 = vunpack.c.h.b16 %v22
  %v111 = vpack.c.b16 %v97, %v95
  %v112 = vpack.c.b16 %v98, %v96
  %v113 = vpack.c.b16 %v101, %v99
  %v114 = vpack.c.b16 %v102, %v100
  %v115 = vpack.c.b16 %v105, %v103
  %v116 = vpack.c.b16 %v106, %v104
  %v117 = vpack.c.b16 %v109, %v107
  %v118 = vpack.c.b16 %v110, %v108
  %v191 = vunpack.c.l.b16 %v23
  %v192 = vunpack.c.h.b16 %v23
  %v193 = vunpack.c.l.b16 %v24
  %v194 = vunpack.c.h.b16 %v24
  %v195 = vunpack.c.l.b16 %v25
  %v196 = vunpack.c.h.b16 %v25
  %v197 = vunpack.c.l.b16 %v26
  %v198 = vunpack.c.h.b16 %v26
  %v199 = vunpack.c.l.b16 %v27
  %v200 = vunpack.c.h.b16 %v27
  %v201 = vunpack.c.l.b16 %v28
  %v202 = vunpack.c.h.b16 %v28
  %v203 = vunpack.c.l.b16 %v29
  %v204 = vunpack.c.h.b16 %v29
  %v205 = vunpack.c.l.b16 %v30
  %v206 = vunpack.c.h.b16 %v30
  %v207 = vunpack.c.l.b16 %v31
  %v208 = vunpack.c.h.b16 %v31
  %v209 = vunpack.c.l.b16 %v32
  %v210 = vunpack.c.h.b16 %v32
  %v211 = vunpack.c.l.b16 %v33
  %v212 = vunpack.c.h.b16 %v33
  %v213 = vunpack.c.l.b16 %v34
  %v214 = vunpack.c.h.b16 %v34
  %v215 = vunpack.c.l.b16 %v35
  %v216 = vunpack.c.h.b16 %v35
  %v217 = vunpack.c.l.b16 %v36
  %v218 = vunpack.c.h.b16 %v36
  %v219 = vunpack.c.l.b16 %v37
  %v220 = vunpack.c.h.b16 %v37
  %v221 = vunpack.c.l.b16 %v38
  %v222 = vunpack.c.h.b16 %v38
  %v223 = vunpack.c.l.b16 %v39
  %v224 = vunpack.c.h.b16 %v39
  %v225 = vunpack.c.l.b16 %v40
  %v226 = vunpack.c.h.b16 %v40
  %v227 = vunpack.c.l.b16 %v41
  %v228 = vunpack.c.h.b16 %v41
  %v229 = vunpack.c.l.b16 %v42
  %v230 = vunpack.c.h.b16 %v42
  %v231 = vunpack.c.l.b16 %v43
  %v232 = vunpack.c.h.b16 %v43
  %v233 = vunpack.c.l.b16 %v44
  %v234 = vunpack.c.h.b16 %v44
  %v235 = vunpack.c.l.b16 %v45
  %v236 = vunpack.c.h.b16 %v45
  %v237 = vunpack.c.l.b16 %v46
  %v238 = vunpack.c.h.b16 %v46
  %v239 = vunpack.c.l.b16 %v47
  %v240 = vunpack.c.h.b16 %v47
  %v241 = vunpack.c.l.b16 %v48
  %v242 = vunpack.c.h.b16 %v48
  %v243 = vunpack.c.l.b16 %v49
  %v244 = vunpack.c.h.b16 %v49
  %v245 = vunpack.c.l.b16 %v50
  %v246 = vunpack.c.h.b16 %v50
  %v247 = vunpack.c.l.b16 %v51
  %v248 = vunpack.c.h.b16 %v51
  %v249 = vunpack.c.l.b16 %v52
  %v250 = vunpack.c.h.b16 %v52
  %v251 = vunpack.c.l.b16 %v53
  %v252 = vunpack.c.h.b16 %v53
  %v253 = vunpack.c.l.b16 %v54
  %v254 = vunpack.c.h.b16 %v54
  %v255 = vunpack.c.l.b16 %v55
  %v256 = vunpack.c.h.b16 %v55
  %v257 = vunpack.c.l.b16 %v56
  %v258 = vunpack.c.h.b16 %v56
  %v259 = vunpack.c.l.b16 %v57
  %v260 = vunpack.c.h.b16 %v57
  %v261 = vunpack.c.l.b16 %v58
  %v262 = vunpack.c.h.b16 %v58
  %v263 = vunpack.c.l.b16 %v59
  %v264 = vunpack.c.h.b16 %v59
  %v265 = vunpack.c.l.b16 %v60
  %v266 = vunpack.c.h.b16 %v60
  %v267 = vunpack.c.l.b16 %v61
  %v268 = vunpack.c.h.b16 %v61
  %v269 = vunpack.c.l.b16 %v62
  %v270 = vunpack.c.h.b16 %v62
  %v271 = vunpack.c.l.b16 %v63
  %v272 = vunpack.c.h.b16 %v63
  %v273 = vunpack.c.l.b16 %v64
  %v274 = vunpack.c.h.b16 %v64
  %v275 = vunpack.c.l.b16 %v65
  %v276 = vunpack.c.h.b16 %v65
  %v277 = vunpack.c.l.b16 %v66
  %v278 = vunpack.c.h.b16 %v66
  %v279 = vunpack.c.l.b16 %v67
  %v280 = vunpack.c.h.b16 %v67
  %v281 = vunpack.c.l.b16 %v68
  %v282 = vunpack.c.h.b16 %v68
  %v283 = vunpack.c.l.b16 %v69
  %v284 = vunpack.c.h.b16 %v69
  %v285 = vunpack.c.l.b16 %v70
  %v286 = vunpack.c.h.b16 %v70
  %v287 = vunpack.c.l.b16 %v71
  %v288 = vunpack.c.h.b16 %v71
  %v289 = vunpack.c.l.b16 %v72
  %v290 = vunpack.c.h.b16 %v72
  %v291 = vunpack.c.l.b16 %v73
  %v292 = vunpack.c.h.b16 %v73
  %v293 = vunpack.c.l.b16 %v74
  %v294 = vunpack.c.h.b16 %v74
  %v295 = vunpack.c.l.b16 %v75
  %v296 = vunpack.c.h.b16 %v75
  %v297 = vunpack.c.l.b16 %v76
  %v298 = vunpack.c.h.b16 %v76
  %v299 = vunpack.c.l.b16 %v77
  %v300 = vunpack.c.h.b16 %v77
  %v301 = vunpack.c.l.b16 %v78
  %v302 = vunpack.c.h.b16 %v78
  %v303 = vunpack.c.l.b16 %v79
  %v304 = vunpack.c.h.b16 %v79
  %v305 = vunpack.c.l.b16 %v80
  %v306 = vunpack.c.h.b16 %v80
  %v307 = vunpack.c.l.b16 %v81
  %v308 = vunpack.c.h.b16 %v81
  %v309 = vunpack.c.l.b16 %v82
  %v310 = vunpack.c.h.b16 %v82
  %v311 = vunpack.c.l.b16 %v83
  %v312 = vunpack.c.h.b16 %v83
  %v313 = vunpack.c.l.b16 %v84
  %v314 = vunpack.c.h.b16 %v84
  %v315 = vunpack.c.l.b16 %v85
  %v316 = vunpack.c.h.b16 %v85
  %v317 = vunpack.c.l.b16 %v86
  %v318 = vunpack.c.h.b16 %v86
  %v319 = vpack.c.b16 %v195, %v191
  %v320 = vpack.c.b16 %v196, %v192
  %v321 = vpack.c.b16 %v197, %v193
  %v322 = vpack.c.b16 %v198, %v194
  %v323 = vpack.c.b16 %v203, %v199
  %v324 = vpack.c.b16 %v204, %v200
  %v325 = vpack.c.b16 %v205, %v201
  %v326 = vpack.c.b16 %v206, %v202
  %v327 = vpack.c.b16 %v211, %v207
  %v328 = vpack.c.b16 %v212, %v208
  %v329 = vpack.c.b16 %v213, %v209
  %v330 = vpack.c.b16 %v214, %v210
  %v331 = vpack.c.b16 %v219, %v215
  %v332 = vpack.c.b16 %v220, %v216
  %v333 = vpack.c.b16 %v221, %v217
  %v334 = vpack.c.b16 %v222, %v218
  %v335 = vpack.c.b16 %v227, %v223
  %v336 = vpack.c.b16 %v228, %v224
  %v337 = vpack.c.b16 %v229, %v225
  %v338 = vpack.c.b16 %v230, %v226
  %v339 = vpack.c.b16 %v235, %v231
  %v340 = vpack.c.b16 %v236, %v232
  %v341 = vpack.c.b16 %v237, %v233
  %v342 = vpack.c.b16 %v238, %v234
  %v343 = vpack.c.b16 %v243, %v239
  %v344 = vpack.c.b16 %v244, %v240
  %v345 = vpack.c.b16 %v245, %v241
  %v346 = vpack.c.b16 %v246, %v242
  %v347 = vpack.c.b16 %v251, %v247
  %v348 = vpack.c.b16 %v252, %v248
  %v349 = vpack.c.b16 %v253, %v249
  %v350 = vpack.c.b16 %v254, %v250
  %v351 = vpack.c.b16 %v259, %v255
  %v352 = vpack.c.b16 %v260, %v256
  %v353 = vpack.c.b16 %v261, %v257
  %v354 = vpack.c.b16 %v262, %v258
  %v355 = vpack.c.b16 %v267, %v263
  %v356 = vpack.c.b16 %v268, %v264
  %v357 = vpack.c.b16 %v269, %v265
  %v358 = vpack.c.b16 %v270, %v266
  %v359 = vpack.c.b16 %v275, %v271
  %v360 = vpack.c.b16 %v276, %v272
  %v361 = vpack.c.b16 %v277, %v273
  %v362 = vpack.c.b16 %v278, %v274
  %v363 = vpack.c.b16 %v283, %v279
  %v364 = vpack.c.b16 %v284, %v280
  %v365 = vpack.c.b16 %v285, %v281
  %v366 = vpack.c.b16 %v286, %v282
  %v367 = vpack.c.b16 %v291, %v287
  %v368 = vpack.c.b16 %v292, %v288
  %v369 = vpack.c.b16 %v293, %v289
  %v370 = vpack.c.b16 %v294, %v290
  %v371 = vpack.c.b16 %v299, %v295
  %v372 = vpack.c.b16 %v300, %v296
  %v373 = vpack.c.b16 %v301, %v297
  %v374 = vpack.c.b16 %v302, %v298
  %v375 = vpack.c.b16 %v307, %v303
  %v376 = vpack.c.b16 %v308, %v304
  %v377 = vpack.c.b16 %v309, %v305
  %v378 = vpack.c.b16 %v310, %v306
  %v379 = vpack.c.b16 %v315, %v311
  %v380 = vpack.c.b16 %v316, %v312
  %v381 = vpack.c.b16 %v317, %v313
  %v382 = vpack.c.b16 %v318, %v314
  %447 = vmatprep.subr.bf16.mxu0 %v320
  %448 = vmatpush1.bf16.msra.mxu0 %v319
  %449 = vmatprep.subr.bf16.mxu0 %v324
  %450 = vmatpush1.bf16.msra.mxu0 %v323
  %451 = vmatprep.subr.bf16.mxu0 %v328
  %452 = vmatpush1.bf16.msra.mxu0 %v327
  %453 = vmatprep.subr.bf16.mxu0 %v332
  %454 = vmatpush1.bf16.msra.mxu0 %v331
  %455 = vmatprep.subr.bf16.mxu0 %v336
  %456 = vmatpush1.bf16.msra.mxu0 %v335
  %457 = vmatprep.subr.bf16.mxu0 %v340
  %458 = vmatpush1.bf16.msra.mxu0 %v339
  %459 = vmatprep.subr.bf16.mxu0 %v344
  %460 = vmatpush1.bf16.msra.mxu0 %v343
  %461 = vmatprep.subr.bf16.mxu0 %v348
  %462 = vmatpush1.bf16.msra.mxu0 %v347
  %463 = vmatprep.subr.bf16.mxu0 %v352
  %464 = vmatpush1.bf16.msra.mxu0 %v351
  %465 = vmatprep.subr.bf16.mxu0 %v356
  %466 = vmatpush1.bf16.msra.mxu0 %v355
  %467 = vmatprep.subr.bf16.mxu0 %v360
  %468 = vmatpush1.bf16.msra.mxu0 %v359
  %469 = vmatprep.subr.bf16.mxu0 %v364
  %470 = vmatpush1.bf16.msra.mxu0 %v363
  %471 = vmatprep.subr.bf16.mxu0 %v368
  %472 = vmatpush1.bf16.msra.mxu0 %v367
  %473 = vmatprep.subr.bf16.mxu0 %v372
  %474 = vmatpush1.bf16.msra.mxu0 %v371
  %475 = vmatprep.subr.bf16.mxu0 %v376
  %476 = vmatpush1.bf16.msra.mxu0 %v375
  %477 = vmatprep.subr.bf16.mxu0 %v380
  %478 = vmatpush1.bf16.msra.mxu0 %v379
  %479 = vmatprep.mubr.bf16.mxu0 %v112
  %480 = vmatmul.mubr.bf16.gmra.mrb[0].mxu0 %v111
  %v481 = vpop.f32.mrb[0].mxu0
  %v482 = vadd.f32 0.0, %v481
  %v483 = vpop.f32.mrb[0].mxu0
  %v484 = vadd.f32 0.0, %v483
  %v485 = vpop.f32.mrb[0].mxu0
  %v486 = vadd.f32 0.0, %v485
  %v487 = vpop.f32.mrb[0].mxu0
  %v488 = vadd.f32 0.0, %v487
  %489 = vmatprep.mubr.bf16.mxu0 %v114
  %490 = vmatmul.mubr.bf16.gmra.mrb[0].mxu0 %v113
  %v491 = vpop.f32.mrb[0].mxu0
  %v492 = vadd.f32 0.0, %v491
  %v493 = vpop.f32.mrb[0].mxu0
  %v494 = vadd.f32 0.0, %v493
  %v495 = vpop.f32.mrb[0].mxu0
  %v496 = vadd.f32 0.0, %v495
  %v497 = vpop.f32.mrb[0].mxu0
  %v498 = vadd.f32 0.0, %v497
  %499 = vmatprep.mubr.bf16.mxu0 %v116
  %500 = vmatmul.mubr.bf16.gmra.mrb[0].mxu0 %v115
  %v501 = vpop.f32.mrb[0].mxu0
  %v502 = vadd.f32 0.0, %v501
  %v503 = vpop.f32.mrb[0].mxu0
  %v504 = vadd.f32 0.0, %v503
  %v505 = vpop.f32.mrb[0].mxu0
  %v506 = vadd.f32 0.0, %v505
  %v507 = vpop.f32.mrb[0].mxu0
  %v508 = vadd.f32 0.0, %v507
  %509 = vmatprep.mubr.bf16.mxu0 %v118
  %510 = vmatmul.mubr.bf16.gmra.mrb[0].mxu0 %v117
  %v511 = vpop.f32.mrb[0].mxu0
  %v512 = vadd.f32 0.0, %v511
  %v513 = vpop.f32.mrb[0].mxu0
  %v514 = vadd.f32 0.0, %v513
  %v515 = vpop.f32.mrb[0].mxu0
  %v516 = vadd.f32 0.0, %v515
  %v517 = vpop.f32.mrb[0].mxu0
  %v518 = vadd.f32 0.0, %v517
  %519 = vdwg.mxu0
  %520 = vmatprep.subr.bf16.mxu0 %v322
  %521 = vmatpush1.bf16.msra.mxu0 %v321
  %522 = vmatprep.subr.bf16.mxu0 %v326
  %523 = vmatpush1.bf16.msra.mxu0 %v325
  %524 = vmatprep.subr.bf16.mxu0 %v330
  %525 = vmatpush1.bf16.msra.mxu0 %v329
  %526 = vmatprep.subr.bf16.mxu0 %v334
  %527 = vmatpush1.bf16.msra.mxu0 %v333
  %528 = vmatprep.subr.bf16.mxu0 %v338
  %529 = vmatpush1.bf16.msra.mxu0 %v337
  %530 = vmatprep.subr.bf16.mxu0 %v342
  %531 = vmatpush1.bf16.msra.mxu0 %v341
  %532 = vmatprep.subr.bf16.mxu0 %v346
  %533 = vmatpush1.bf16.msra.mxu0 %v345
  %534 = vmatprep.subr.bf16.mxu0 %v350
  %535 = vmatpush1.bf16.msra.mxu0 %v349
  %536 = vmatprep.subr.bf16.mxu0 %v354
  %537 = vmatpush1.bf16.msra.mxu0 %v353
  %538 = vmatprep.subr.bf16.mxu0 %v358
  %539 = vmatpush1.bf16.msra.mxu0 %v357
  %540 = vmatprep.subr.bf16.mxu0 %v362
  %541 = vmatpush1.bf16.msra.mxu0 %v361
  %542 = vmatprep.subr.bf16.mxu0 %v366
  %543 = vmatpush1.bf16.msra.mxu0 %v365
  %544 = vmatprep.subr.bf16.mxu0 %v370
  %545 = vmatpush1.bf16.msra.mxu0 %v369
  %546 = vmatprep.subr.bf16.mxu0 %v374
  %547 = vmatpush1.bf16.msra.mxu0 %v373
  %548 = vmatprep.subr.bf16.mxu0 %v378
  %549 = vmatpush1.bf16.msra.mxu0 %v377
  %550 = vmatprep.subr.bf16.mxu0 %v382
  %551 = vmatpush1.bf16.msra.mxu0 %v381
  %552 = vmatprep.mubr.bf16.mxu0 %v112
  %553 = vmatmul.mubr.bf16.gmra.mrb[0].mxu0 %v111
  %v554 = vpop.f32.mrb[0].mxu0
  %v555 = vadd.f32 0.0, %v554
  %v556 = vpop.f32.mrb[0].mxu0
  %v557 = vadd.f32 0.0, %v556
  %v558 = vpop.f32.mrb[0].mxu0
  %v559 = vadd.f32 0.0, %v558
  %v560 = vpop.f32.mrb[0].mxu0
  %v561 = vadd.f32 0.0, %v560
  %562 = vmatprep.mubr.bf16.mxu0 %v114
  %563 = vmatmul.mubr.bf16.gmra.mrb[0].mxu0 %v113
  %v564 = vpop.f32.mrb[0].mxu0
  %v565 = vadd.f32 0.0, %v564
  %v566 = vpop.f32.mrb[0].mxu0
  %v567 = vadd.f32 0.0, %v566
  %v568 = vpop.f32.mrb[0].mxu0
  %v569 = vadd.f32 0.0, %v568
  %v570 = vpop.f32.mrb[0].mxu0
  %v571 = vadd.f32 0.0, %v570
  %572 = vmatprep.mubr.bf16.mxu0 %v116
  %573 = vmatmul.mubr.bf16.gmra.mrb[0].mxu0 %v115
  %v574 = vpop.f32.mrb[0].mxu0
  %v575 = vadd.f32 0.0, %v574
  %v576 = vpop.f32.mrb[0].mxu0
  %v577 = vadd.f32 0.0, %v576
  %v578 = vpop.f32.mrb[0].mxu0
  %v579 = vadd.f32 0.0, %v578
  %v580 = vpop.f32.mrb[0].mxu0
  %v581 = vadd.f32 0.0, %v580
  %582 = vmatprep.mubr.bf16.mxu0 %v118
  %583 = vmatmul.mubr.bf16.gmra.mrb[0].mxu0 %v117
  %v584 = vpop.f32.mrb[0].mxu0
  %v585 = vadd.f32 0.0, %v584
  %v586 = vpop.f32.mrb[0].mxu0
  %v587 = vadd.f32 0.0, %v586
  %v588 = vpop.f32.mrb[0].mxu0
  %v589 = vadd.f32 0.0, %v588
  %v590 = vpop.f32.mrb[0].mxu0
  %v591 = vadd.f32 0.0, %v590
  %592 = vdwg.mxu0
  %593 = vst [vmem:[#allocation2] sm:$0xff] %v482
  %594 = vst [vmem:[#allocation2 + $0x8] sm:$0xff] %v484
  %595 = vst [vmem:[#allocation2 + $0x10] sm:$0xff] %v555
  %596 = vst [vmem:[#allocation2 + $0x18] sm:$0xff] %v557
  %597 = vst [vmem:[#allocation2 + $0x20] sm:$0xff] %v486
  %598 = vst [vmem:[#allocation2 + $0x28] sm:$0xff] %v488
  %599 = vst [vmem:[#allocation2 + $0x30] sm:$0xff] %v559
  %600 = vst [vmem:[#allocation2 + $0x38] sm:$0xff] %v561
  %601 = vst [vmem:[#allocation2 + $0x40] sm:$0xff] %v492
  %602 = vst [vmem:[#allocation2 + $0x48] sm:$0xff] %v494
  %603 = vst [vmem:[#allocation2 + $0x50] sm:$0xff] %v565
  %604 = vst [vmem:[#allocation2 + $0x58] sm:$0xff] %v567
  %605 = vst [vmem:[#allocation2 + $0x60] sm:$0xff] %v496
  %606 = vst [vmem:[#allocation2 + $0x68] sm:$0xff] %v498
  %607 = vst [vmem:[#allocation2 + $0x70] sm:$0xff] %v569
  %608 = vst [vmem:[#allocation2 + $0x78] sm:$0xff] %v571
  %609 = vst [vmem:[#allocation2 + $0x80] sm:$0xff] %v502
  %610 = vst [vmem:[#allocation2 + $0x88] sm:$0xff] %v504
  %611 = vst [vmem:[#allocation2 + $0x90] sm:$0xff] %v575
  %612 = vst [vmem:[#allocation2 + $0x98] sm:$0xff] %v577
  %613 = vst [vmem:[#allocation2 + $0xa0] sm:$0xff] %v506
  %614 = vst [vmem:[#allocation2 + $0xa8] sm:$0xff] %v508
  %615 = vst [vmem:[#allocation2 + $0xb0] sm:$0xff] %v579
  %616 = vst [vmem:[#allocation2 + $0xb8] sm:$0xff] %v581
  %617 = vst [vmem:[#allocation2 + $0xc0] sm:$0xff] %v512
  %618 = vst [vmem:[#allocation2 + $0xc8] sm:$0xff] %v514
  %619 = vst [vmem:[#allocation2 + $0xd0] sm:$0xff] %v585
  %620 = vst [vmem:[#allocation2 + $0xd8] sm:$0xff] %v587
  %621 = vst [vmem:[#allocation2 + $0xe0] sm:$0xff] %v516
  %622 = vst [vmem:[#allocation2 + $0xe8] sm:$0xff] %v518
  %623 = vst [vmem:[#allocation2 + $0xf0] sm:$0xff] %v589
  %624 = vst [vmem:[#allocation2 + $0xf8] sm:$0xff] %v591
  %v625 = vld [vmem:[#allocation2] sm:$0xff]
  %v626 = vld [vmem:[#allocation2 + $0x8] sm:$0xff]
  %v627 = vld [vmem:[#allocation2 + $0x10] sm:$0xff]
  %v628 = vld [vmem:[#allocation2 + $0x18] sm:$0xff]
  %v629 = vld [vmem:[%s2] sm:$0xff]
  %v630 = vld [vmem:[%s2 + $0x8] sm:$0xff]
  %v631 = vld [vmem:[%s2 + $0x10] sm:$0xff]
  %v632 = vld [vmem:[%s2 + $0x18] sm:$0xff]
  %v633 = vld [vmem:[%s2 + $0x20] sm:$0xff]
  %v634 = vld [vmem:[%s2 + $0x28] sm:$0xff]
  %v635 = vld [vmem:[%s2 + $0x30] sm:$0xff]
  %v636 = vld [vmem:[%s2 + $0x38] sm:$0xff]
  %v637 = vld [vmem:[%s2 + $0x40] sm:$0xff]
  %v638 = vld [vmem:[%s2 + $0x48] sm:$0xff]
  %v639 = vld [vmem:[%s2 + $0x50] sm:$0xff]
  %v640 = vld [vmem:[%s2 + $0x58] sm:$0xff]
  %v641 = vld [vmem:[%s2 + $0x60] sm:$0xff]
  %v642 = vld [vmem:[%s2 + $0x68] sm:$0xff]
  %v643 = vld [vmem:[%s2 + $0x70] sm:$0xff]
  %v644 = vld [vmem:[%s2 + $0x78] sm:$0xff]
  %v645 = vld [vmem:[%s2 + $0x80] sm:$0xff]
  %v646 = vld [vmem:[%s2 + $0x88] sm:$0xff]
  %v647 = vld [vmem:[%s2 + $0x90] sm:$0xff]
  %v648 = vld [vmem:[%s2 + $0x98] sm:$0xff]
  %v649 = vld [vmem:[%s2 + $0xa0] sm:$0xff]
  %v650 = vld [vmem:[%s2 + $0xa8] sm:$0xff]
  %v651 = vld [vmem:[%s2 + $0xb0] sm:$0xff]
  %v652 = vld [vmem:[%s2 + $0xb8] sm:$0xff]
  %v653 = vld [vmem:[%s2 + $0xc0] sm:$0xff]
  %v654 = vld [vmem:[%s2 + $0xc8] sm:$0xff]
  %v655 = vld [vmem:[%s2 + $0xd0] sm:$0xff]
  %v656 = vld [vmem:[%s2 + $0xd8] sm:$0xff]
  %v657 = vld [vmem:[%s2 + $0xe0] sm:$0xff]
  %v658 = vld [vmem:[%s2 + $0xe8] sm:$0xff]
  %v659 = vld [vmem:[%s2 + $0xf0] sm:$0xff]
  %v660 = vld [vmem:[%s2 + $0xf8] sm:$0xff]
  %v693 = vunpack.c.l.b16 %v629
  %v694 = vunpack.c.h.b16 %v629
  %v695 = vunpack.c.l.b16 %v630
  %v696 = vunpack.c.h.b16 %v630
  %v697 = vunpack.c.l.b16 %v631
  %v698 = vunpack.c.h.b16 %v631
  %v699 = vunpack.c.l.b16 %v632
  %v700 = vunpack.c.h.b16 %v632
  %v701 = vunpack.c.l.b16 %v633
  %v702 = vunpack.c.h.b16 %v633
  %v703 = vunpack.c.l.b16 %v634
  %v704 = vunpack.c.h.b16 %v634
  %v705 = vunpack.c.l.b16 %v635
  %v706 = vunpack.c.h.b16 %v635
  %v707 = vunpack.c.l.b16 %v636
  %v708 = vunpack.c.h.b16 %v636
  %v709 = vunpack.c.l.b16 %v637
  %v710 = vunpack.c.h.b16 %v637
  %v711 = vunpack.c.l.b16 %v638
  %v712 = vunpack.c.h.b16 %v638
  %v713 = vunpack.c.l.b16 %v639
  %v714 = vunpack.c.h.b16 %v639
  %v715 = vunpack.c.l.b16 %v640
  %v716 = vunpack.c.h.b16 %v640
  %v717 = vunpack.c.l.b16 %v641
  %v718 = vunpack.c.h.b16 %v641
  %v719 = vunpack.c.l.b16 %v642
  %v720 = vunpack.c.h.b16 %v642
  %v721 = vunpack.c.l.b16 %v643
  %v722 = vunpack.c.h.b16 %v643
  %v723 = vunpack.c.l.b16 %v644
  %v724 = vunpack.c.h.b16 %v644
  %v725 = vunpack.c.l.b16 %v645
  %v726 = vunpack.c.h.b16 %v645
  %v727 = vunpack.c.l.b16 %v646
  %v728 = vunpack.c.h.b16 %v646
  %v729 = vunpack.c.l.b16 %v647
  %v730 = vunpack.c.h.b16 %v647
  %v731 = vunpack.c.l.b16 %v648
  %v732 = vunpack.c.h.b16 %v648
  %v733 = vunpack.c.l.b16 %v649
  %v734 = vunpack.c.h.b16 %v649
  %v735 = vunpack.c.l.b16 %v650
  %v736 = vunpack.c.h.b16 %v650
  %v737 = vunpack.c.l.b16 %v651
  %v738 = vunpack.c.h.b16 %v651
  %v739 = vunpack.c.l.b16 %v652
  %v740 = vunpack.c.h.b16 %v652
  %v741 = vunpack.c.l.b16 %v653
  %v742 = vunpack.c.h.b16 %v653
  %v743 = vunpack.c.l.b16 %v654
  %v744 = vunpack.c.h.b16 %v654
  %v745 = vunpack.c.l.b16 %v655
  %v746 = vunpack.c.h.b16 %v655
  %v747 = vunpack.c.l.b16 %v656
  %v748 = vunpack.c.h.b16 %v656
  %v749 = vunpack.c.l.b16 %v657
  %v750 = vunpack.c.h.b16 %v657
  %v751 = vunpack.c.l.b16 %v658
  %v752 = vunpack.c.h.b16 %v658
  %v753 = vunpack.c.l.b16 %v659
  %v754 = vunpack.c.h.b16 %v659
  %v755 = vunpack.c.l.b16 %v660
  %v756 = vunpack.c.h.b16 %v660
  %v757 = vpack.c.b16 %v697, %v693
  %v758 = vpack.c.b16 %v698, %v694
  %v759 = vpack.c.b16 %v699, %v695
  %v760 = vpack.c.b16 %v700, %v696
  %v761 = vpack.c.b16 %v705, %v701
  %v762 = vpack.c.b16 %v706, %v702
  %v763 = vpack.c.b16 %v707, %v703
  %v764 = vpack.c.b16 %v708, %v704
  %v765 = vpack.c.b16 %v713, %v709
  %v766 = vpack.c.b16 %v714, %v710
  %v767 = vpack.c.b16 %v715, %v711
  %v768 = vpack.c.b16 %v716, %v712
  %v769 = vpack.c.b16 %v721, %v717
  %v770 = vpack.c.b16 %v722, %v718
  %v771 = vpack.c.b16 %v723, %v719
  %v772 = vpack.c.b16 %v724, %v720
  %v773 = vpack.c.b16 %v729, %v725
  %v774 = vpack.c.b16 %v730, %v726
  %v775 = vpack.c.b16 %v731, %v727
  %v776 = vpack.c.b16 %v732, %v728
  %v777 = vpack.c.b16 %v737, %v733
  %v778 = vpack.c.b16 %v738, %v734
  %v779 = vpack.c.b16 %v739, %v735
  %v780 = vpack.c.b16 %v740, %v736
  %v781 = vpack.c.b16 %v745, %v741
  %v782 = vpack.c.b16 %v746, %v742
  %v783 = vpack.c.b16 %v747, %v743
  %v784 = vpack.c.b16 %v748, %v744
  %v785 = vpack.c.b16 %v753, %v749
  %v786 = vpack.c.b16 %v754, %v750
  %v787 = vpack.c.b16 %v755, %v751
  %v788 = vpack.c.b16 %v756, %v752
  %821 = vmatprep.subr.bf16.mxu0 %v758
  %822 = vmatpush1.bf16.msra.mxu0 %v757
  %823 = vmatprep.subr.bf16.mxu0 %v762
  %824 = vmatpush1.bf16.msra.mxu0 %v761
  %825 = vmatprep.subr.bf16.mxu0 %v766
  %826 = vmatpush1.bf16.msra.mxu0 %v765
  %827 = vmatprep.subr.bf16.mxu0 %v770
  %828 = vmatpush1.bf16.msra.mxu0 %v769
  %829 = vmatprep.subr.bf16.mxu0 %v774
  %830 = vmatpush1.bf16.msra.mxu0 %v773
  %831 = vmatprep.subr.bf16.mxu0 %v778
  %832 = vmatpush1.bf16.msra.mxu0 %v777
  %833 = vmatprep.subr.bf16.mxu0 %v782
  %834 = vmatpush1.bf16.msra.mxu0 %v781
  %835 = vmatprep.subr.bf16.mxu0 %v786
  %836 = vmatpush1.bf16.msra.mxu0 %v785
  %837 = vmatprep.subr.bf16.mxu0 0
  %838 = vmatpush1.bf16.msra.mxu0 0
  %839 = vmatprep.subr.bf16.mxu0 0
  %840 = vmatpush1.bf16.msra.mxu0 0
  %841 = vmatprep.subr.bf16.mxu0 0
  %842 = vmatpush1.bf16.msra.mxu0 0
  %843 = vmatprep.subr.bf16.mxu0 0
  %844 = vmatpush1.bf16.msra.mxu0 0
  %845 = vmatprep.subr.bf16.mxu0 0
  %846 = vmatpush1.bf16.msra.mxu0 0
  %847 = vmatprep.subr.bf16.mxu0 0
  %848 = vmatpush1.bf16.msra.mxu0 0
  %849 = vmatprep.subr.bf16.mxu0 0
  %850 = vmatpush1.bf16.msra.mxu0 0
  %851 = vmatprep.subr.bf16.mxu0 0
  %852 = vmatpush1.bf16.msra.mxu0 0
  %853 = vmatprep.mubr.bf16.mxu0 0
  %854 = vmatmul.mubr.bf16.gmra.mrb[0].mxu0 0
  %v855 = vpop.f32.mrb[0].mxu0
  %v856 = vadd.f32 0.0, %v855
  %v857 = vpop.f32.mrb[0].mxu0
  %v858 = vadd.f32 0.0, %v857
  %v859 = vpop.f32.mrb[0].mxu0
  %v860 = vpop.f32.mrb[0].mxu0
  %861 = vdwg.mxu0
  %862 = vmatprep.subr.bf16.mxu0 %v760
  %863 = vmatpush1.bf16.msra.mxu0 %v759
  %864 = vmatprep.subr.bf16.mxu0 %v764
  %865 = vmatpush1.bf16.msra.mxu0 %v763
  %866 = vmatprep.subr.bf16.mxu0 %v768
  %867 = vmatpush1.bf16.msra.mxu0 %v767
  %868 = vmatprep.subr.bf16.mxu0 %v772
  %869 = vmatpush1.bf16.msra.mxu0 %v771
  %870 = vmatprep.subr.bf16.mxu0 %v776
  %871 = vmatpush1.bf16.msra.mxu0 %v775
  %872 = vmatprep.subr.bf16.mxu0 %v780
  %873 = vmatpush1.bf16.msra.mxu0 %v779
  %874 = vmatprep.subr.bf16.mxu0 %v784
  %875 = vmatpush1.bf16.msra.mxu0 %v783
  %876 = vmatprep.subr.bf16.mxu0 %v788
  %877 = vmatpush1.bf16.msra.mxu0 %v787
  %878 = vmatprep.subr.bf16.mxu0 0
  %879 = vmatpush1.bf16.msra.mxu0 0
  %880 = vmatprep.subr.bf16.mxu0 0
  %881 = vmatpush1.bf16.msra.mxu0 0
  %882 = vmatprep.subr.bf16.mxu0 0
  %883 = vmatpush1.bf16.msra.mxu0 0
  %884 = vmatprep.subr.bf16.mxu0 0
  %885 = vmatpush1.bf16.msra.mxu0 0
  %886 = vmatprep.subr.bf16.mxu0 0
  %887 = vmatpush1.bf16.msra.mxu0 0
  %888 = vmatprep.subr.bf16.mxu0 0
  %889 = vmatpush1.bf16.msra.mxu0 0
  %890 = vmatprep.subr.bf16.mxu0 0
  %891 = vmatpush1.bf16.msra.mxu0 0
  %892 = vmatprep.subr.bf16.mxu0 0
  %893 = vmatpush1.bf16.msra.mxu0 0
  %894 = vmatprep.mubr.bf16.mxu0 0
  %895 = vmatmul.mubr.bf16.gmra.mrb[0].mxu0 0
  %v896 = vpop.f32.mrb[0].mxu0
  %v897 = vadd.f32 0.0, %v896
  %v898 = vpop.f32.mrb[0].mxu0
  %v899 = vadd.f32 0.0, %v898
  %v900 = vpop.f32.mrb[0].mxu0
  %v901 = vpop.f32.mrb[0].mxu0
  %902 = vdwg.mxu0
  %v903 = vadd.f32 %v625, %v856
  %v904 = vadd.f32 %v626, %v858
  %v905 = vadd.f32 %v627, %v897
  %v906 = vadd.f32 %v628, %v899
  %v907 = vmul.f32 %v903, 0.5
  %v908 = vmul.f32 %v904, 0.5
  %v909 = vmul.f32 %v905, 0.5
  %v910 = vtanh.pop %v907
  %v911 = vtanh.pop %v908
  %v912 = vtanh.pop %v909
  %v913 = vmul.f32 %v910, 0.5
  %v914 = vmul.f32 %v911, 0.5
  %v915 = vmul.f32 %v912, 0.5
  %v916 = vadd.f32 %v913, 0.5
  %v917 = vadd.f32 %v914, 0.5
  %v918 = vadd.f32 %v915, 0.5
  %v919 = vtanh.pop %v906
  %v920 = vmul.f32 %v917, 0.0
  %v921 = vmul.f32 %v916, %v919
  %v922 = vadd.f32 %v920, %v921
  %v923 = vtanh.pop %v922
  %v924 = vmul.f32 %v918, %v923
  %v925 = vld [vmem:[#allocation2 + $0x20] sm:$0xff]
  %v926 = vld [vmem:[#allocation2 + $0x28] sm:$0xff]
  %v927 = vld [vmem:[#allocation2 + $0x30] sm:$0xff]
  %v928 = vld [vmem:[#allocation2 + $0x38] sm:$0xff]
  %v929 = vpack.c.bf16 %v924, %v924
  %930 = vmatprep.subr.bf16.mxu0 %v758
  %931 = vmatpush1.bf16.msra.mxu0 %v757
  %932 = vmatprep.subr.bf16.mxu0 %v762
  %933 = vmatpush1.bf16.msra.mxu0 %v761
  %934 = vmatprep.subr.bf16.mxu0 %v766
  %935 = vmatpush1.bf16.msra.mxu0 %v765
  %936 = vmatprep.subr.bf16.mxu0 %v770
  %937 = vmatpush1.bf16.msra.mxu0 %v769
  %938 = vmatprep.subr.bf16.mxu0 %v774
  %939 = vmatpush1.bf16.msra.mxu0 %v773
  %940 = vmatprep.subr.bf16.mxu0 %v778
  %941 = vmatpush1.bf16.msra.mxu0 %v777
  %942 = vmatprep.subr.bf16.mxu0 %v782
  %943 = vmatpush1.bf16.msra.mxu0 %v781
  %944 = vmatprep.subr.bf16.mxu0 %v786
  %945 = vmatpush1.bf16.msra.mxu0 %v785
  %946 = vmatprep.subr.bf16.mxu0 0
  %947 = vmatpush1.bf16.msra.mxu0 0
  %948 = vmatprep.subr.bf16.mxu0 0
  %949 = vmatpush1.bf16.msra.mxu0 0
  %950 = vmatprep.subr.bf16.mxu0 0
  %951 = vmatpush1.bf16.msra.mxu0 0
  %952 = vmatprep.subr.bf16.mxu0 0
  %953 = vmatpush1.bf16.msra.mxu0 0
  %954 = vmatprep.subr.bf16.mxu0 0
  %955 = vmatpush1.bf16.msra.mxu0 0
  %956 = vmatprep.subr.bf16.mxu0 0
  %957 = vmatpush1.bf16.msra.mxu0 0
  %958 = vmatprep.subr.bf16.mxu0 0
  %959 = vmatpush1.bf16.msra.mxu0 0
  %960 = vmatprep.subr.bf16.mxu0 0
  %961 = vmatpush1.bf16.msra.mxu0 0
  %962 = vmatprep.mubr.bf16.mxu0 0
  %963 = vmatmul.mubr.bf16.gmra.mrb[0].mxu0 %v929
  %v964 = vpop.f32.mrb[0].mxu0
  %v965 = vadd.f32 0.0, %v964
  %v966 = vpop.f32.mrb[0].mxu0
  %v967 = vadd.f32 0.0, %v966
  %v968 = vpop.f32.mrb[0].mxu0
  %v969 = vpop.f32.mrb[0].mxu0
  %970 = vdwg.mxu0
  %971 = vmatprep.subr.bf16.mxu0 %v760
  %972 = vmatpush1.bf16.msra.mxu0 %v759
  %973 = vmatprep.subr.bf16.mxu0 %v764
  %974 = vmatpush1.bf16.msra.mxu0 %v763
  %975 = vmatprep.subr.bf16.mxu0 %v768
  %976 = vmatpush1.bf16.msra.mxu0 %v767
  %977 = vmatprep.subr.bf16.mxu0 %v772
  %978 = vmatpush1.bf16.msra.mxu0 %v771
  %979 = vmatprep.subr.bf16.mxu0 %v776
  %980 = vmatpush1.bf16.msra.mxu0 %v775
  %981 = vmatprep.subr.bf16.mxu0 %v780
  %982 = vmatpush1.bf16.msra.mxu0 %v779
  %983 = vmatprep.subr.bf16.mxu0 %v784
  %984 = vmatpush1.bf16.msra.mxu0 %v783
  %985 = vmatprep.subr.bf16.mxu0 %v788
  %986 = vmatpush1.bf16.msra.mxu0 %v787
  %987 = vmatprep.subr.bf16.mxu0 0
  %988 = vmatpush1.bf16.msra.mxu0 0
  %989 = vmatprep.subr.bf16.mxu0 0
  %990 = vmatpush1.bf16.msra.mxu0 0
  %991 = vmatprep.subr.bf16.mxu0 0
  %992 = vmatpush1.bf16.msra.mxu0 0
  %993 = vmatprep.subr.bf16.mxu0 0
  %994 = vmatpush1.bf16.msra.mxu0 0
  %995 = vmatprep.subr.bf16.mxu0 0
  %996 = vmatpush1.bf16.msra.mxu0 0
  %997 = vmatprep.subr.bf16.mxu0 0
  %998 = vmatpush1.bf16.msra.mxu0 0
  %999 = vmatprep.subr.bf16.mxu0 0
  %1000 = vmatpush1.bf16.msra.mxu0 0
  %1001 = vmatprep.subr.bf16.mxu0 0
  %1002 = vmatpush1.bf16.msra.mxu0 0
  %1003 = vmatprep.mubr.bf16.mxu0 0
  %1004 = vmatmul.mubr.bf16.gmra.mrb[0].mxu0 %v929
  %v1005 = vpop.f32.mrb[0].mxu0
  %v1006 = vadd.f32 0.0, %v1005
  %v1007 = vpop.f32.mrb[0].mxu0
  %v1008 = vadd.f32 0.0, %v1007
  %v1009 = vpop.f32.mrb[0].mxu0
  %v1010 = vpop.f32.mrb[0].mxu0
  %1011 = vdwg.mxu0
  %v1012 = vadd.f32 %v925, %v965
  %v1013 = vadd.f32 %v926, %v967
  %v1014 = vadd.f32 %v927, %v1006
  %v1015 = vadd.f32 %v928, %v1008
  %v1016 = vmul.f32 %v1012, 0.5
  %v1017 = vmul.f32 %v1013, 0.5
  %v1018 = vmul.f32 %v1014, 0.5
  %v1019 = vtanh.pop %v1016
  %v1020 = vtanh.pop %v1017
  %v1021 = vtanh.pop %v1018
  %v1022 = vmul.f32 %v1019, 0.5
  %v1023 = vmul.f32 %v1020, 0.5
  %v1024 = vmul.f32 %v1021, 0.5
  %v1025 = vadd.f32 %v1022, 0.5
  %v1026 = vadd.f32 %v1023, 0.5
  %v1027 = vadd.f32 %v1024, 0.5
  %v1028 = vtanh.pop %v1015
  %v1029 = vmul.f32 %v1026, %v922
  %v1030 = vmul.f32 %v1025, %v1028
  %v1031 = vadd.f32 %v1029, %v1030
  %v1032 = vtanh.pop %v1031
  %v1033 = vmul.f32 %v1027, %v1032
  %v1034 = vld [vmem:[#allocation2 + $0x40] sm:$0xff]
  %v1035 = vld [vmem:[#allocation2 + $0x48] sm:$0xff]
  %v1036 = vld [vmem:[#allocation2 + $0x50] sm:$0xff]
  %v1037 = vld [vmem:[#allocation2 + $0x58] sm:$0xff]
  %v1038 = vpack.c.bf16 %v1033, %v1033
  %1039 = vmatprep.subr.bf16.mxu0 %v758
  %1040 = vmatpush1.bf16.msra.mxu0 %v757
  %1041 = vmatprep.subr.bf16.mxu0 %v762
  %1042 = vmatpush1.bf16.msra.mxu0 %v761
  %1043 = vmatprep.subr.bf16.mxu0 %v766
  %1044 = vmatpush1.bf16.msra.mxu0 %v765
  %1045 = vmatprep.subr.bf16.mxu0 %v770
  %1046 = vmatpush1.bf16.msra.mxu0 %v769
  %1047 = vmatprep.subr.bf16.mxu0 %v774
  %1048 = vmatpush1.bf16.msra.mxu0 %v773
  %1049 = vmatprep.subr.bf16.mxu0 %v778
  %1050 = vmatpush1.bf16.msra.mxu0 %v777
  %1051 = vmatprep.subr.bf16.mxu0 %v782
  %1052 = vmatpush1.bf16.msra.mxu0 %v781
  %1053 = vmatprep.subr.bf16.mxu0 %v786
  %1054 = vmatpush1.bf16.msra.mxu0 %v785
  %1055 = vmatprep.subr.bf16.mxu0 0
  %1056 = vmatpush1.bf16.msra.mxu0 0
  %1057 = vmatprep.subr.bf16.mxu0 0
  %1058 = vmatpush1.bf16.msra.mxu0 0
  %1059 = vmatprep.subr.bf16.mxu0 0
  %1060 = vmatpush1.bf16.msra.mxu0 0
  %1061 = vmatprep.subr.bf16.mxu0 0
  %1062 = vmatpush1.bf16.msra.mxu0 0
  %1063 = vmatprep.subr.bf16.mxu0 0
  %1064 = vmatpush1.bf16.msra.mxu0 0
  %1065 = vmatprep.subr.bf16.mxu0 0
  %1066 = vmatpush1.bf16.msra.mxu0 0
  %1067 = vmatprep.subr.bf16.mxu0 0
  %1068 = vmatpush1.bf16.msra.mxu0 0
  %1069 = vmatprep.subr.bf16.mxu0 0
  %1070 = vmatpush1.bf16.msra.mxu0 0
  %1071 = vmatprep.mubr.bf16.mxu0 0
  %1072 = vmatmul.mubr.bf16.gmra.mrb[0].mxu0 %v1038
  %v1073 = vpop.f32.mrb[0].mxu0
  %v1074 = vadd.f32 0.0, %v1073
  %v1075 = vpop.f32.mrb[0].mxu0
  %v1076 = vadd.f32 0.0, %v1075
  %v1077 = vpop.f32.mrb[0].mxu0
  %v1078 = vpop.f32.mrb[0].mxu0
  %1079 = vdwg.mxu0
  %1080 = vmatprep.subr.bf16.mxu0 %v760
  %1081 = vmatpush1.bf16.msra.mxu0 %v759
  %1082 = vmatprep.subr.bf16.mxu0 %v764
  %1083 = vmatpush1.bf16.msra.mxu0 %v763
  %1084 = vmatprep.subr.bf16.mxu0 %v768
  %1085 = vmatpush1.bf16.msra.mxu0 %v767
  %1086 = vmatprep.subr.bf16.mxu0 %v772
  %1087 = vmatpush1.bf16.msra.mxu0 %v771
  %1088 = vmatprep.subr.bf16.mxu0 %v776
  %1089 = vmatpush1.bf16.msra.mxu0 %v775
  %1090 = vmatprep.subr.bf16.mxu0 %v780
  %1091 = vmatpush1.bf16.msra.mxu0 %v779
  %1092 = vmatprep.subr.bf16.mxu0 %v784
  %1093 = vmatpush1.bf16.msra.mxu0 %v783
  %1094 = vmatprep.subr.bf16.mxu0 %v788
  %1095 = vmatpush1.bf16.msra.mxu0 %v787
  %1096 = vmatprep.subr.bf16.mxu0 0
  %1097 = vmatpush1.bf16.msra.mxu0 0
  %1098 = vmatprep.subr.bf16.mxu0 0
  %1099 = vmatpush1.bf16.msra.mxu0 0
  %1100 = vmatprep.subr.bf16.mxu0 0
  %1101 = vmatpush1.bf16.msra.mxu0 0
  %1102 = vmatprep.subr.bf16.mxu0 0
  %1103 = vmatpush1.bf16.msra.mxu0 0
  %1104 = vmatprep.subr.bf16.mxu0 0
  %1105 = vmatpush1.bf16.msra.mxu0 0
  %1106 = vmatprep.subr.bf16.mxu0 0
  %1107 = vmatpush1.bf16.msra.mxu0 0
  %1108 = vmatprep.subr.bf16.mxu0 0
  %1109 = vmatpush1.bf16.msra.mxu0 0
  %1110 = vmatprep.subr.bf16.mxu0 0
  %1111 = vmatpush1.bf16.msra.mxu0 0
  %1112 = vmatprep.mubr.bf16.mxu0 0
  %1113 = vmatmul.mubr.bf16.gmra.mrb[0].mxu0 %v1038
  %v1114 = vpop.f32.mrb[0].mxu0
  %v1115 = vadd.f32 0.0, %v1114
  %v1116 = vpop.f32.mrb[0].mxu0
  %v1117 = vadd.f32 0.0, %v1116
  %v1118 = vpop.f32.mrb[0].mxu0
  %v1119 = vpop.f32.mrb[0].mxu0
  %1120 = vdwg.mxu0
  %v1121 = vadd.f32 %v1034, %v1074
  %v1122 = vadd.f32 %v1035, %v1076
  %v1123 = vadd.f32 %v1036, %v1115
  %v1124 = vadd.f32 %v1037, %v1117
  %v1125 = vmul.f32 %v1121, 0.5
  %v1126 = vmul.f32 %v1122, 0.5
  %v1127 = vmul.f32 %v1123, 0.5
  %v1128 = vtanh.pop %v1125
  %v1129 = vtanh.pop %v1126
  %v1130 = vtanh.pop %v1127
  %v1131 = vmul.f32 %v1128, 0.5
  %v1132 = vmul.f32 %v1129, 0.5
  %v1133 = vmul.f32 %v1130, 0.5
  %v1134 = vadd.f32 %v1131, 0.5
  %v1135 = vadd.f32 %v1132, 0.5
  %v1136 = vadd.f32 %v1133, 0.5
  %v1137 = vtanh.pop %v1124
  %v1138 = vmul.f32 %v1135, %v1031
  %v1139 = vmul.f32 %v1134, %v1137
  %v1140 = vadd.f32 %v1138, %v1139
  %v1141 = vtanh.pop %v1140
  %v1142 = vmul.f32 %v1136, %v1141
  %v1143 = vld [vmem:[#allocation2 + $0x60] sm:$0xff]
  %v1144 = vld [vmem:[#allocation2 + $0x68] sm:$0xff]
  %v1145 = vld [vmem:[#allocation2 + $0x70] sm:$0xff]
  %v1146 = vld [vmem:[#allocation2 + $0x78] sm:$0xff]
  %v1147 = vpack.c.bf16 %v1142, %v1142
  %1148 = vmatprep.subr.bf16.mxu0 %v758
  %1149 = vmatpush1.bf16.msra.mxu0 %v757
  %1150 = vmatprep.subr.bf16.mxu0 %v762
  %1151 = vmatpush1.bf16.msra.mxu0 %v761
  %1152 = vmatprep.subr.bf16.mxu0 %v766
  %1153 = vmatpush1.bf16.msra.mxu0 %v765
  %1154 = vmatprep.subr.bf16.mxu0 %v770
  %1155 = vmatpush1.bf16.msra.mxu0 %v769
  %1156 = vmatprep.subr.bf16.mxu0 %v774
  %1157 = vmatpush1.bf16.msra.mxu0 %v773
  %1158 = vmatprep.subr.bf16.mxu0 %v778
  %1159 = vmatpush1.bf16.msra.mxu0 %v777
  %1160 = vmatprep.subr.bf16.mxu0 %v782
  %1161 = vmatpush1.bf16.msra.mxu0 %v781
  %1162 = vmatprep.subr.bf16.mxu0 %v786
  %1163 = vmatpush1.bf16.msra.mxu0 %v785
  %1164 = vmatprep.subr.bf16.mxu0 0
  %1165 = vmatpush1.bf16.msra.mxu0 0
  %1166 = vmatprep.subr.bf16.mxu0 0
  %1167 = vmatpush1.bf16.msra.mxu0 0
  %1168 = vmatprep.subr.bf16.mxu0 0
  %1169 = vmatpush1.bf16.msra.mxu0 0
  %1170 = vmatprep.subr.bf16.mxu0 0
  %1171 = vmatpush1.bf16.msra.mxu0 0
  %1172 = vmatprep.subr.bf16.mxu0 0
  %1173 = vmatpush1.bf16.msra.mxu0 0
  %1174 = vmatprep.subr.bf16.mxu0 0
  %1175 = vmatpush1.bf16.msra.mxu0 0
  %1176 = vmatprep.subr.bf16.mxu0 0
  %1177 = vmatpush1.bf16.msra.mxu0 0
  %1178 = vmatprep.subr.bf16.mxu0 0
  %1179 = vmatpush1.bf16.msra.mxu0 0
  %1180 = vmatprep.mubr.bf16.mxu0 0
  %1181 = vmatmul.mubr.bf16.gmra.mrb[0].mxu0 %v1147
  %v1182 = vpop.f32.mrb[0].mxu0
  %v1183 = vadd.f32 0.0, %v1182
  %v1184 = vpop.f32.mrb[0].mxu0
  %v1185 = vadd.f32 0.0, %v1184
  %v1186 = vpop.f32.mrb[0].mxu0
  %v1187 = vpop.f32.mrb[0].mxu0
  %1188 = vdwg.mxu0
  %1189 = vmatprep.subr.bf16.mxu0 %v760
  %1190 = vmatpush1.bf16.msra.mxu0 %v759
  %1191 = vmatprep.subr.bf16.mxu0 %v764
  %1192 = vmatpush1.bf16.msra.mxu0 %v763
  %1193 = vmatprep.subr.bf16.mxu0 %v768
  %1194 = vmatpush1.bf16.msra.mxu0 %v767
  %1195 = vmatprep.subr.bf16.mxu0 %v772
  %1196 = vmatpush1.bf16.msra.mxu0 %v771
  %1197 = vmatprep.subr.bf16.mxu0 %v776
  %1198 = vmatpush1.bf16.msra.mxu0 %v775
  %1199 = vmatprep.subr.bf16.mxu0 %v780
  %1200 = vmatpush1.bf16.msra.mxu0 %v779
  %1201 = vmatprep.subr.bf16.mxu0 %v784
  %1202 = vmatpush1.bf16.msra.mxu0 %v783
  %1203 = vmatprep.subr.bf16.mxu0 %v788
  %1204 = vmatpush1.bf16.msra.mxu0 %v787
  %1205 = vmatprep.subr.bf16.mxu0 0
  %1206 = vmatpush1.bf16.msra.mxu0 0
  %1207 = vmatprep.subr.bf16.mxu0 0
  %1208 = vmatpush1.bf16.msra.mxu0 0
  %1209 = vmatprep.subr.bf16.mxu0 0
  %1210 = vmatpush1.bf16.msra.mxu0 0
  %1211 = vmatprep.subr.bf16.mxu0 0
  %1212 = vmatpush1.bf16.msra.mxu0 0
  %1213 = vmatprep.subr.bf16.mxu0 0
  %1214 = vmatpush1.bf16.msra.mxu0 0
  %1215 = vmatprep.subr.bf16.mxu0 0
  %1216 = vmatpush1.bf16.msra.mxu0 0
  %1217 = vmatprep.subr.bf16.mxu0 0
  %1218 = vmatpush1.bf16.msra.mxu0 0
  %1219 = vmatprep.subr.bf16.mxu0 0
  %1220 = vmatpush1.bf16.msra.mxu0 0
  %1221 = vmatprep.mubr.bf16.mxu0 0
  %1222 = vmatmul.mubr.bf16.gmra.mrb[0].mxu0 %v1147
  %v1223 = vpop.f32.mrb[0].mxu0
  %v1224 = vadd.f32 0.0, %v1223
  %v1225 = vpop.f32.mrb[0].mxu0
  %v1226 = vadd.f32 0.0, %v1225
  %v1227 = vpop.f32.mrb[0].mxu0
  %v1228 = vpop.f32.mrb[0].mxu0
  %1229 = vdwg.mxu0
  %v1230 = vadd.f32 %v1143, %v1183
  %v1231 = vadd.f32 %v1144, %v1185
  %v1232 = vadd.f32 %v1145, %v1224
  %v1233 = vadd.f32 %v1146, %v1226
  %v1234 = vmul.f32 %v1230, 0.5
  %v1235 = vmul.f32 %v1231, 0.5
  %v1236 = vmul.f32 %v1232, 0.5
  %v1237 = vtanh.pop %v1234
  %v1238 = vtanh.pop %v1235
  %v1239 = vtanh.pop %v1236
  %v1240 = vmul.f32 %v1237, 0.5
  %v1241 = vmul.f32 %v1238, 0.5
  %v1242 = vmul.f32 %v1239, 0.5
  %v1243 = vadd.f32 %v1240, 0.5
  %v1244 = vadd.f32 %v1241, 0.5
  %v1245 = vadd.f32 %v1242, 0.5
  %v1246 = vtanh.pop %v1233
  %v1247 = vmul.f32 %v1244, %v1140
  %v1248 = vmul.f32 %v1243, %v1246
  %v1249 = vadd.f32 %v1247, %v1248
  %v1250 = vtanh.pop %v1249
  %v1251 = vmul.f32 %v1245, %v1250
  %v1252 = vld [vmem:[#allocation2 + $0x80] sm:$0xff]
  %v1253 = vld [vmem:[#allocation2 + $0x88] sm:$0xff]
  %v1254 = vld [vmem:[#allocation2 + $0x90] sm:$0xff]
  %v1255 = vld [vmem:[#allocation2 + $0x98] sm:$0xff]
  %v1256 = vpack.c.bf16 %v1251, %v1251
  %1257 = vmatprep.subr.bf16.mxu0 %v758
  %1258 = vmatpush1.bf16.msra.mxu0 %v757
  %1259 = vmatprep.subr.bf16.mxu0 %v762
  %1260 = vmatpush1.bf16.msra.mxu0 %v761
  %1261 = vmatprep.subr.bf16.mxu0 %v766
  %1262 = vmatpush1.bf16.msra.mxu0 %v765
  %1263 = vmatprep.subr.bf16.mxu0 %v770
  %1264 = vmatpush1.bf16.msra.mxu0 %v769
  %1265 = vmatprep.subr.bf16.mxu0 %v774
  %1266 = vmatpush1.bf16.msra.mxu0 %v773
  %1267 = vmatprep.subr.bf16.mxu0 %v778
  %1268 = vmatpush1.bf16.msra.mxu0 %v777
  %1269 = vmatprep.subr.bf16.mxu0 %v782
  %1270 = vmatpush1.bf16.msra.mxu0 %v781
  %1271 = vmatprep.subr.bf16.mxu0 %v786
  %1272 = vmatpush1.bf16.msra.mxu0 %v785
  %1273 = vmatprep.subr.bf16.mxu0 0
  %1274 = vmatpush1.bf16.msra.mxu0 0
  %1275 = vmatprep.subr.bf16.mxu0 0
  %1276 = vmatpush1.bf16.msra.mxu0 0
  %1277 = vmatprep.subr.bf16.mxu0 0
  %1278 = vmatpush1.bf16.msra.mxu0 0
  %1279 = vmatprep.subr.bf16.mxu0 0
  %1280 = vmatpush1.bf16.msra.mxu0 0
  %1281 = vmatprep.subr.bf16.mxu0 0
  %1282 = vmatpush1.bf16.msra.mxu0 0
  %1283 = vmatprep.subr.bf16.mxu0 0
  %1284 = vmatpush1.bf16.msra.mxu0 0
  %1285 = vmatprep.subr.bf16.mxu0 0
  %1286 = vmatpush1.bf16.msra.mxu0 0
  %1287 = vmatprep.subr.bf16.mxu0 0
  %1288 = vmatpush1.bf16.msra.mxu0 0
  %1289 = vmatprep.mubr.bf16.mxu0 0
  %1290 = vmatmul.mubr.bf16.gmra.mrb[0].mxu0 %v1256
  %v1291 = vpop.f32.mrb[0].mxu0
  %v1292 = vadd.f32 0.0, %v1291
  %v1293 = vpop.f32.mrb[0].mxu0
  %v1294 = vadd.f32 0.0, %v1293
  %v1295 = vpop.f32.mrb[0].mxu0
  %v1296 = vpop.f32.mrb[0].mxu0
  %1297 = vdwg.mxu0
  %1298 = vmatprep.subr.bf16.mxu0 %v760
  %1299 = vmatpush1.bf16.msra.mxu0 %v759
  %1300 = vmatprep.subr.bf16.mxu0 %v764
  %1301 = vmatpush1.bf16.msra.mxu0 %v763
  %1302 = vmatprep.subr.bf16.mxu0 %v768
  %1303 = vmatpush1.bf16.msra.mxu0 %v767
  %1304 = vmatprep.subr.bf16.mxu0 %v772
  %1305 = vmatpush1.bf16.msra.mxu0 %v771
  %1306 = vmatprep.subr.bf16.mxu0 %v776
  %1307 = vmatpush1.bf16.msra.mxu0 %v775
  %1308 = vmatprep.subr.bf16.mxu0 %v780
  %1309 = vmatpush1.bf16.msra.mxu0 %v779
  %1310 = vmatprep.subr.bf16.mxu0 %v784
  %1311 = vmatpush1.bf16.msra.mxu0 %v783
  %1312 = vmatprep.subr.bf16.mxu0 %v788
  %1313 = vmatpush1.bf16.msra.mxu0 %v787
  %1314 = vmatprep.subr.bf16.mxu0 0
  %1315 = vmatpush1.bf16.msra.mxu0 0
  %1316 = vmatprep.subr.bf16.mxu0 0
  %1317 = vmatpush1.bf16.msra.mxu0 0
  %1318 = vmatprep.subr.bf16.mxu0 0
  %1319 = vmatpush1.bf16.msra.mxu0 0
  %1320 = vmatprep.subr.bf16.mxu0 0
  %1321 = vmatpush1.bf16.msra.mxu0 0
  %1322 = vmatprep.subr.bf16.mxu0 0
  %1323 = vmatpush1.bf16.msra.mxu0 0
  %1324 = vmatprep.subr.bf16.mxu0 0
  %1325 = vmatpush1.bf16.msra.mxu0 0
  %1326 = vmatprep.subr.bf16.mxu0 0
  %1327 = vmatpush1.bf16.msra.mxu0 0
  %1328 = vmatprep.subr.bf16.mxu0 0
  %1329 = vmatpush1.bf16.msra.mxu0 0
  %1330 = vmatprep.mubr.bf16.mxu0 0
  %1331 = vmatmul.mubr.bf16.gmra.mrb[0].mxu0 %v1256
  %v1332 = vpop.f32.mrb[0].mxu0
  %v1333 = vadd.f32 0.0, %v1332
  %v1334 = vpop.f32.mrb[0].mxu0
  %v1335 = vadd.f32 0.0, %v1334
  %v1336 = vpop.f32.mrb[0].mxu0
  %v1337 = vpop.f32.mrb[0].mxu0
  %1338 = vdwg.mxu0
  %v1339 = vadd.f32 %v1252, %v1292
  %v1340 = vadd.f32 %v1253, %v1294
  %v1341 = vadd.f32 %v1254, %v1333
  %v1342 = vadd.f32 %v1255, %v1335
  %v1343 = vmul.f32 %v1339, 0.5
  %v1344 = vmul.f32 %v1340, 0.5
  %v1345 = vmul.f32 %v1341, 0.5
  %v1346 = vtanh.pop %v1343
  %v1347 = vtanh.pop %v1344
  %v1348 = vtanh.pop %v1345
  %v1349 = vmul.f32 %v1346, 0.5
  %v1350 = vmul.f32 %v1347, 0.5
  %v1351 = vmul.f32 %v1348, 0.5
  %v1352 = vadd.f32 %v1349, 0.5
  %v1353 = vadd.f32 %v1350, 0.5
  %v1354 = vadd.f32 %v1351, 0.5
  %v1355 = vtanh.pop %v1342
  %v1356 = vmul.f32 %v1353, %v1249
  %v1357 = vmul.f32 %v1352, %v1355
  %v1358 = vadd.f32 %v1356, %v1357
  %v1359 = vtanh.pop %v1358
  %v1360 = vmul.f32 %v1354, %v1359
  %v1361 = vld [vmem:[#allocation2 + $0xa0] sm:$0xff]
  %v1362 = vld [vmem:[#allocation2 + $0xa8] sm:$0xff]
  %v1363 = vld [vmem:[#allocation2 + $0xb0] sm:$0xff]
  %v1364 = vld [vmem:[#allocation2 + $0xb8] sm:$0xff]
  %v1365 = vpack.c.bf16 %v1360, %v1360
  %1366 = vmatprep.subr.bf16.mxu0 %v758
  %1367 = vmatpush1.bf16.msra.mxu0 %v757
  %1368 = vmatprep.subr.bf16.mxu0 %v762
  %1369 = vmatpush1.bf16.msra.mxu0 %v761
  %1370 = vmatprep.subr.bf16.mxu0 %v766
  %1371 = vmatpush1.bf16.msra.mxu0 %v765
  %1372 = vmatprep.subr.bf16.mxu0 %v770
  %1373 = vmatpush1.bf16.msra.mxu0 %v769
  %1374 = vmatprep.subr.bf16.mxu0 %v774
  %1375 = vmatpush1.bf16.msra.mxu0 %v773
  %1376 = vmatprep.subr.bf16.mxu0 %v778
  %1377 = vmatpush1.bf16.msra.mxu0 %v777
  %1378 = vmatprep.subr.bf16.mxu0 %v782
  %1379 = vmatpush1.bf16.msra.mxu0 %v781
  %1380 = vmatprep.subr.bf16.mxu0 %v786
  %1381 = vmatpush1.bf16.msra.mxu0 %v785
  %1382 = vmatprep.subr.bf16.mxu0 0
  %1383 = vmatpush1.bf16.msra.mxu0 0
  %1384 = vmatprep.subr.bf16.mxu0 0
  %1385 = vmatpush1.bf16.msra.mxu0 0
  %1386 = vmatprep.subr.bf16.mxu0 0
  %1387 = vmatpush1.bf16.msra.mxu0 0
  %1388 = vmatprep.subr.bf16.mxu0 0
  %1389 = vmatpush1.bf16.msra.mxu0 0
  %1390 = vmatprep.subr.bf16.mxu0 0
  %1391 = vmatpush1.bf16.msra.mxu0 0
  %1392 = vmatprep.subr.bf16.mxu0 0
  %1393 = vmatpush1.bf16.msra.mxu0 0
  %1394 = vmatprep.subr.bf16.mxu0 0
  %1395 = vmatpush1.bf16.msra.mxu0 0
  %1396 = vmatprep.subr.bf16.mxu0 0
  %1397 = vmatpush1.bf16.msra.mxu0 0
  %1398 = vmatprep.mubr.bf16.mxu0 0
  %1399 = vmatmul.mubr.bf16.gmra.mrb[0].mxu0 %v1365
  %v1400 = vpop.f32.mrb[0].mxu0
  %v1401 = vadd.f32 0.0, %v1400
  %v1402 = vpop.f32.mrb[0].mxu0
  %v1403 = vadd.f32 0.0, %v1402
  %v1404 = vpop.f32.mrb[0].mxu0
  %v1405 = vpop.f32.mrb[0].mxu0
  %1406 = vdwg.mxu0
  %1407 = vmatprep.subr.bf16.mxu0 %v760
  %1408 = vmatpush1.bf16.msra.mxu0 %v759
  %1409 = vmatprep.subr.bf16.mxu0 %v764
  %1410 = vmatpush1.bf16.msra.mxu0 %v763
  %1411 = vmatprep.subr.bf16.mxu0 %v768
  %1412 = vmatpush1.bf16.msra.mxu0 %v767
  %1413 = vmatprep.subr.bf16.mxu0 %v772
  %1414 = vmatpush1.bf16.msra.mxu0 %v771
  %1415 = vmatprep.subr.bf16.mxu0 %v776
  %1416 = vmatpush1.bf16.msra.mxu0 %v775
  %1417 = vmatprep.subr.bf16.mxu0 %v780
  %1418 = vmatpush1.bf16.msra.mxu0 %v779
  %1419 = vmatprep.subr.bf16.mxu0 %v784
  %1420 = vmatpush1.bf16.msra.mxu0 %v783
  %1421 = vmatprep.subr.bf16.mxu0 %v788
  %1422 = vmatpush1.bf16.msra.mxu0 %v787
  %1423 = vmatprep.subr.bf16.mxu0 0
  %1424 = vmatpush1.bf16.msra.mxu0 0
  %1425 = vmatprep.subr.bf16.mxu0 0
  %1426 = vmatpush1.bf16.msra.mxu0 0
  %1427 = vmatprep.subr.bf16.mxu0 0
  %1428 = vmatpush1.bf16.msra.mxu0 0
  %1429 = vmatprep.subr.bf16.mxu0 0
  %1430 = vmatpush1.bf16.msra.mxu0 0
  %1431 = vmatprep.subr.bf16.mxu0 0
  %1432 = vmatpush1.bf16.msra.mxu0 0
  %1433 = vmatprep.subr.bf16.mxu0 0
  %1434 = vmatpush1.bf16.msra.mxu0 0
  %1435 = vmatprep.subr.bf16.mxu0 0
  %1436 = vmatpush1.bf16.msra.mxu0 0
  %1437 = vmatprep.subr.bf16.mxu0 0
  %1438 = vmatpush1.bf16.msra.mxu0 0
  %1439 = vmatprep.mubr.bf16.mxu0 0
  %1440 = vmatmul.mubr.bf16.gmra.mrb[0].mxu0 %v1365
  %v1441 = vpop.f32.mrb[0].mxu0
  %v1442 = vadd.f32 0.0, %v1441
  %v1443 = vpop.f32.mrb[0].mxu0
  %v1444 = vadd.f32 0.0, %v1443
  %v1445 = vpop.f32.mrb[0].mxu0
  %v1446 = vpop.f32.mrb[0].mxu0
  %1447 = vdwg.mxu0
  %v1448 = vadd.f32 %v1361, %v1401
  %v1449 = vadd.f32 %v1362, %v1403
  %v1450 = vadd.f32 %v1363, %v1442
  %v1451 = vadd.f32 %v1364, %v1444
  %v1452 = vmul.f32 %v1448, 0.5
  %v1453 = vmul.f32 %v1449, 0.5
  %v1454 = vmul.f32 %v1450, 0.5
  %v1455 = vtanh.pop %v1452
  %v1456 = vtanh.pop %v1453
  %v1457 = vtanh.pop %v1454
  %v1458 = vmul.f32 %v1455, 0.5
  %v1459 = vmul.f32 %v1456, 0.5
  %v1460 = vmul.f32 %v1457, 0.5
  %v1461 = vadd.f32 %v1458, 0.5
  %v1462 = vadd.f32 %v1459, 0.5
  %v1463 = vadd.f32 %v1460, 0.5
  %v1464 = vtanh.pop %v1451
  %v1465 = vmul.f32 %v1462, %v1358
  %v1466 = vmul.f32 %v1461, %v1464
  %v1467 = vadd.f32 %v1465, %v1466
  %v1468 = vtanh.pop %v1467
  %v1469 = vmul.f32 %v1463, %v1468
  %v1470 = vld [vmem:[#allocation2 + $0xc0] sm:$0xff]
  %v1471 = vld [vmem:[#allocation2 + $0xc8] sm:$0xff]
  %v1472 = vld [vmem:[#allocation2 + $0xd0] sm:$0xff]
  %v1473 = vld [vmem:[#allocation2 + $0xd8] sm:$0xff]
  %v1474 = vpack.c.bf16 %v1469, %v1469
  %1475 = vmatprep.subr.bf16.mxu0 %v758
  %1476 = vmatpush1.bf16.msra.mxu0 %v757
  %1477 = vmatprep.subr.bf16.mxu0 %v762
  %1478 = vmatpush1.bf16.msra.mxu0 %v761
  %1479 = vmatprep.subr.bf16.mxu0 %v766
  %1480 = vmatpush1.bf16.msra.mxu0 %v765
  %1481 = vmatprep.subr.bf16.mxu0 %v770
  %1482 = vmatpush1.bf16.msra.mxu0 %v769
  %1483 = vmatprep.subr.bf16.mxu0 %v774
  %1484 = vmatpush1.bf16.msra.mxu0 %v773
  %1485 = vmatprep.subr.bf16.mxu0 %v778
  %1486 = vmatpush1.bf16.msra.mxu0 %v777
  %1487 = vmatprep.subr.bf16.mxu0 %v782
  %1488 = vmatpush1.bf16.msra.mxu0 %v781
  %1489 = vmatprep.subr.bf16.mxu0 %v786
  %1490 = vmatpush1.bf16.msra.mxu0 %v785
  %1491 = vmatprep.subr.bf16.mxu0 0
  %1492 = vmatpush1.bf16.msra.mxu0 0
  %1493 = vmatprep.subr.bf16.mxu0 0
  %1494 = vmatpush1.bf16.msra.mxu0 0
  %1495 = vmatprep.subr.bf16.mxu0 0
  %1496 = vmatpush1.bf16.msra.mxu0 0
  %1497 = vmatprep.subr.bf16.mxu0 0
  %1498 = vmatpush1.bf16.msra.mxu0 0
  %1499 = vmatprep.subr.bf16.mxu0 0
  %1500 = vmatpush1.bf16.msra.mxu0 0
  %1501 = vmatprep.subr.bf16.mxu0 0
  %1502 = vmatpush1.bf16.msra.mxu0 0
  %1503 = vmatprep.subr.bf16.mxu0 0
  %1504 = vmatpush1.bf16.msra.mxu0 0
  %1505 = vmatprep.subr.bf16.mxu0 0
  %1506 = vmatpush1.bf16.msra.mxu0 0
  %1507 = vmatprep.mubr.bf16.mxu0 0
  %1508 = vmatmul.mubr.bf16.gmra.mrb[0].mxu0 %v1474
  %v1509 = vpop.f32.mrb[0].mxu0
  %v1510 = vadd.f32 0.0, %v1509
  %v1511 = vpop.f32.mrb[0].mxu0
  %v1512 = vadd.f32 0.0, %v1511
  %v1513 = vpop.f32.mrb[0].mxu0
  %v1514 = vpop.f32.mrb[0].mxu0
  %1515 = vdwg.mxu0
  %1516 = vmatprep.subr.bf16.mxu0 %v760
  %1517 = vmatpush1.bf16.msra.mxu0 %v759
  %1518 = vmatprep.subr.bf16.mxu0 %v764
  %1519 = vmatpush1.bf16.msra.mxu0 %v763
  %1520 = vmatprep.subr.bf16.mxu0 %v768
  %1521 = vmatpush1.bf16.msra.mxu0 %v767
  %1522 = vmatprep.subr.bf16.mxu0 %v772
  %1523 = vmatpush1.bf16.msra.mxu0 %v771
  %1524 = vmatprep.subr.bf16.mxu0 %v776
  %1525 = vmatpush1.bf16.msra.mxu0 %v775
  %1526 = vmatprep.subr.bf16.mxu0 %v780
  %1527 = vmatpush1.bf16.msra.mxu0 %v779
  %1528 = vmatprep.subr.bf16.mxu0 %v784
  %1529 = vmatpush1.bf16.msra.mxu0 %v783
  %1530 = vmatprep.subr.bf16.mxu0 %v788
  %1531 = vmatpush1.bf16.msra.mxu0 %v787
  %1532 = vmatprep.subr.bf16.mxu0 0
  %1533 = vmatpush1.bf16.msra.mxu0 0
  %1534 = vmatprep.subr.bf16.mxu0 0
  %1535 = vmatpush1.bf16.msra.mxu0 0
  %1536 = vmatprep.subr.bf16.mxu0 0
  %1537 = vmatpush1.bf16.msra.mxu0 0
  %1538 = vmatprep.subr.bf16.mxu0 0
  %1539 = vmatpush1.bf16.msra.mxu0 0
  %1540 = vmatprep.subr.bf16.mxu0 0
  %1541 = vmatpush1.bf16.msra.mxu0 0
  %1542 = vmatprep.subr.bf16.mxu0 0
  %1543 = vmatpush1.bf16.msra.mxu0 0
  %1544 = vmatprep.subr.bf16.mxu0 0
  %1545 = vmatpush1.bf16.msra.mxu0 0
  %1546 = vmatprep.subr.bf16.mxu0 0
  %1547 = vmatpush1.bf16.msra.mxu0 0
  %1548 = vmatprep.mubr.bf16.mxu0 0
  %1549 = vmatmul.mubr.bf16.gmra.mrb[0].mxu0 %v1474
  %v1550 = vpop.f32.mrb[0].mxu0
  %v1551 = vadd.f32 0.0, %v1550
  %v1552 = vpop.f32.mrb[0].mxu0
  %v1553 = vadd.f32 0.0, %v1552
  %v1554 = vpop.f32.mrb[0].mxu0
  %v1555 = vpop.f32.mrb[0].mxu0
  %1556 = vdwg.mxu0
  %v1557 = vadd.f32 %v1470, %v1510
  %v1558 = vadd.f32 %v1471, %v1512
  %v1559 = vadd.f32 %v1472, %v1551
  %v1560 = vadd.f32 %v1473, %v1553
  %v1561 = vmul.f32 %v1557, 0.5
  %v1562 = vmul.f32 %v1558, 0.5
  %v1563 = vmul.f32 %v1559, 0.5
  %v1564 = vtanh.pop %v1561
  %v1565 = vtanh.pop %v1562
  %v1566 = vtanh.pop %v1563
  %v1567 = vmul.f32 %v1564, 0.5
  %v1568 = vmul.f32 %v1565, 0.5
  %v1569 = vmul.f32 %v1566, 0.5
  %v1570 = vadd.f32 %v1567, 0.5
  %v1571 = vadd.f32 %v1568, 0.5
  %v1572 = vadd.f32 %v1569, 0.5
  %v1573 = vtanh.pop %v1560
  %v1574 = vmul.f32 %v1571, %v1467
  %v1575 = vmul.f32 %v1570, %v1573
  %v1576 = vadd.f32 %v1574, %v1575
  %v1577 = vtanh.pop %v1576
  %v1578 = vmul.f32 %v1572, %v1577
  %v1579 = vld [vmem:[#allocation2 + $0xe0] sm:$0xff]
  %v1580 = vld [vmem:[#allocation2 + $0xe8] sm:$0xff]
  %v1581 = vld [vmem:[#allocation2 + $0xf0] sm:$0xff]
  %v1582 = vld [vmem:[#allocation2 + $0xf8] sm:$0xff]
  %v1583 = vpack.c.bf16 %v1578, %v1578
  %1584 = vmatprep.subr.bf16.mxu0 %v758
  %1585 = vmatpush1.bf16.msra.mxu0 %v757
  %1586 = vmatprep.subr.bf16.mxu0 %v762
  %1587 = vmatpush1.bf16.msra.mxu0 %v761
  %1588 = vmatprep.subr.bf16.mxu0 %v766
  %1589 = vmatpush1.bf16.msra.mxu0 %v765
  %1590 = vmatprep.subr.bf16.mxu0 %v770
  %1591 = vmatpush1.bf16.msra.mxu0 %v769
  %1592 = vmatprep.subr.bf16.mxu0 %v774
  %1593 = vmatpush1.bf16.msra.mxu0 %v773
  %1594 = vmatprep.subr.bf16.mxu0 %v778
  %1595 = vmatpush1.bf16.msra.mxu0 %v777
  %1596 = vmatprep.subr.bf16.mxu0 %v782
  %1597 = vmatpush1.bf16.msra.mxu0 %v781
  %1598 = vmatprep.subr.bf16.mxu0 %v786
  %1599 = vmatpush1.bf16.msra.mxu0 %v785
  %1600 = vmatprep.subr.bf16.mxu0 0
  %1601 = vmatpush1.bf16.msra.mxu0 0
  %1602 = vmatprep.subr.bf16.mxu0 0
  %1603 = vmatpush1.bf16.msra.mxu0 0
  %1604 = vmatprep.subr.bf16.mxu0 0
  %1605 = vmatpush1.bf16.msra.mxu0 0
  %1606 = vmatprep.subr.bf16.mxu0 0
  %1607 = vmatpush1.bf16.msra.mxu0 0
  %1608 = vmatprep.subr.bf16.mxu0 0
  %1609 = vmatpush1.bf16.msra.mxu0 0
  %1610 = vmatprep.subr.bf16.mxu0 0
  %1611 = vmatpush1.bf16.msra.mxu0 0
  %1612 = vmatprep.subr.bf16.mxu0 0
  %1613 = vmatpush1.bf16.msra.mxu0 0
  %1614 = vmatprep.subr.bf16.mxu0 0
  %1615 = vmatpush1.bf16.msra.mxu0 0
  %1616 = vmatprep.mubr.bf16.mxu0 0
  %1617 = vmatmul.mubr.bf16.gmra.mrb[0].mxu0 %v1583
  %v1618 = vpop.f32.mrb[0].mxu0
  %v1619 = vadd.f32 0.0, %v1618
  %v1620 = vpop.f32.mrb[0].mxu0
  %v1621 = vadd.f32 0.0, %v1620
  %v1622 = vpop.f32.mrb[0].mxu0
  %v1623 = vpop.f32.mrb[0].mxu0
  %1624 = vdwg.mxu0
  %1625 = vmatprep.subr.bf16.mxu0 %v760
  %1626 = vmatpush1.bf16.msra.mxu0 %v759
  %1627 = vmatprep.subr.bf16.mxu0 %v764
  %1628 = vmatpush1.bf16.msra.mxu0 %v763
  %1629 = vmatprep.subr.bf16.mxu0 %v768
  %1630 = vmatpush1.bf16.msra.mxu0 %v767
  %1631 = vmatprep.subr.bf16.mxu0 %v772
  %1632 = vmatpush1.bf16.msra.mxu0 %v771
  %1633 = vmatprep.subr.bf16.mxu0 %v776
  %1634 = vmatpush1.bf16.msra.mxu0 %v775
  %1635 = vmatprep.subr.bf16.mxu0 %v780
  %1636 = vmatpush1.bf16.msra.mxu0 %v779
  %1637 = vmatprep.subr.bf16.mxu0 %v784
  %1638 = vmatpush1.bf16.msra.mxu0 %v783
  %1639 = vmatprep.subr.bf16.mxu0 %v788
  %1640 = vmatpush1.bf16.msra.mxu0 %v787
  %1641 = vmatprep.subr.bf16.mxu0 0
  %1642 = vmatpush1.bf16.msra.mxu0 0
  %1643 = vmatprep.subr.bf16.mxu0 0
  %1644 = vmatpush1.bf16.msra.mxu0 0
  %1645 = vmatprep.subr.bf16.mxu0 0
  %1646 = vmatpush1.bf16.msra.mxu0 0
  %1647 = vmatprep.subr.bf16.mxu0 0
  %1648 = vmatpush1.bf16.msra.mxu0 0
  %1649 = vmatprep.subr.bf16.mxu0 0
  %1650 = vmatpush1.bf16.msra.mxu0 0
  %1651 = vmatprep.subr.bf16.mxu0 0
  %1652 = vmatpush1.bf16.msra.mxu0 0
  %1653 = vmatprep.subr.bf16.mxu0 0
  %1654 = vmatpush1.bf16.msra.mxu0 0
  %1655 = vmatprep.subr.bf16.mxu0 0
  %1656 = vmatpush1.bf16.msra.mxu0 0
  %1657 = vmatprep.mubr.bf16.mxu0 0
  %1658 = vmatmul.mubr.bf16.gmra.mrb[0].mxu0 %v1583
  %v1659 = vpop.f32.mrb[0].mxu0
  %v1660 = vadd.f32 0.0, %v1659
  %v1661 = vpop.f32.mrb[0].mxu0
  %v1662 = vadd.f32 0.0, %v1661
  %v1663 = vpop.f32.mrb[0].mxu0
  %v1664 = vpop.f32.mrb[0].mxu0
  %1665 = vdwg.mxu0
  %v1666 = vadd.f32 %v1579, %v1619
  %v1667 = vadd.f32 %v1580, %v1621
  %v1668 = vadd.f32 %v1581, %v1660
  %v1669 = vadd.f32 %v1582, %v1662
  %v1670 = vmul.f32 %v1666, 0.5
  %v1671 = vmul.f32 %v1667, 0.5
  %v1672 = vmul.f32 %v1668, 0.5
  %v1673 = vtanh.pop %v1670
  %v1674 = vtanh.pop %v1671
  %v1675 = vtanh.pop %v1672
  %v1676 = vmul.f32 %v1673, 0.5
  %v1677 = vmul.f32 %v1674, 0.5
  %v1678 = vmul.f32 %v1675, 0.5
  %v1679 = vadd.f32 %v1676, 0.5
  %v1680 = vadd.f32 %v1677, 0.5
  %v1681 = vadd.f32 %v1678, 0.5
  %v1682 = vtanh.pop %v1669
  %v1683 = vmul.f32 %v1680, %v1576
  %v1684 = vmul.f32 %v1679, %v1682
  %v1685 = vadd.f32 %v1683, %v1684
  %v1686 = vtanh.pop %v1685
  %v1687 = vmul.f32 %v1681, %v1686
  %1688 = vst [vmem:[%s3] sm:$0xff] %v1687
  // Predicated region
  $region14: #{mymodel_forward.1} parent=0 // pred_check
    _
  $region15: #{mymodel_forward.1} parent=0 // pred_check_branch
    %1690 = sbr.rel (0) target = $region17
  $region16: #{mymodel_forward.1} parent=0 // pred_region
    _
  $region17: #{mymodel_forward.1} parent=0 // pred_fallthru
    _
  // Predicated region
  $region18: #{mymodel_forward.1} parent=0 // pred_check
    _
  $region19: #{mymodel_forward.1} parent=0 // pred_check_branch
    %1692 = sbr.rel (0) target = $region21
  $region20: #{mymodel_forward.1} parent=0 // pred_region
    _
  $region21: #{mymodel_forward.1} parent=0 // pred_fallthru
    _

</llo_original>
